<compile_context>
chip_gen: v6e
topology: v6e:2x2x1
jax: 0.10.0
libtpu: 0.0.40
codegen_flags: <defaults>
</compile_context>

<pallas_src>
import functools

import jax
import jax.numpy as jnp
from jax.experimental import pallas as pl
from jax.experimental.pallas import tpu as pltpu


# --------------------------------------------------------------------------
# Hardware queries (all guarded; fall back to conservative defaults).
# --------------------------------------------------------------------------

def _device_kind():
    try:
        return jax.devices()[0].device_kind.lower()
    except Exception:
        return ""


def _is_multi_tc_device():
    """v7x has 2 TensorCores per chip; older parts have 1."""
    kind = _device_kind()
    return ("v7" in kind) or ("7x" in kind)


def _vmem_capacity_bytes():
    try:
        return int(pltpu.get_tpu_info().vmem_capacity_bytes)
    except Exception:
        kind = _device_kind()
        if ("v7" in kind) or ("7x" in kind):
            return 64 * 2**20
        return 128 * 2**20


def _max_tm_for_device():
    """Per-generation cap on the token tile (arithmetic-intensity lever)."""
    kind = _device_kind()
    if ("v5e" in kind) or ("v5 lite" in kind) or ("v5lite" in kind):
        return 256   # ridge ~240 FLOP/B: tm=256 already reaches compute-bound
    if "v6" in kind:
        return 512   # worst compute:HBM ratio; go as big as 128 MiB allows
    if ("v7" in kind) or ("7x" in kind):
        return 384   # only 64 MiB VMEM per TensorCore
    return 512


# --------------------------------------------------------------------------
# Tile selection.
# --------------------------------------------------------------------------

_TI_CANDIDATES = (1024, 512, 384, 256, 128)   # multiples of 128 only
_TM_CANDIDATES = (512, 384, 256, 128, 64, 32, 16, 8)


def _vmem_footprint(tm, ti, H, x_isz, w_isz, o_isz):
    """Double-buffered in/out tiles + resident f32 accumulator (bytes)."""
    # NOTE: o_ref is only written on the last I step; pl.Buffered(1) on the
    # out spec would reclaim one (tm, H) buffer on 64-MiB v7x, but we keep the
    # default double buffering here and simply budget for it.
    return (2 * (tm * H * x_isz            # x tile
                 + H * 2 * ti * w_isz      # fused [gate|up] weight tile
                 + ti * H * w_isz          # down-proj weight tile
                 + tm * H * o_isz)         # out tile
            + tm * H * 4)                  # f32 accumulator scratch


def select_tiles(T, H, I, *, x_dtype=jnp.bfloat16, w_dtype=jnp.bfloat16,
                 out_dtype=None, vmem_cap=None):
    """Hardware-aware (tm, ti) choice.

    tm gives ~tm FLOPs per weight byte, so maximize it first (up to the
    per-generation cap), then pick the largest ti that still fits ~80% of
    VMEM.  ti stays a multiple of 128 (2*ti multiple of 256 for the MXU and a
    lane-aligned gate/up split) and must divide I.
    """
    if out_dtype is None:
        out_dtype = x_dtype
    if vmem_cap is None:
        vmem_cap = _vmem_capacity_bytes()
    budget = int(0.80 * vmem_cap)

    x_isz = jnp.dtype(x_dtype).itemsize
    w_isz = jnp.dtype(w_dtype).itemsize
    o_isz = jnp.dtype(out_dtype).itemsize
    sub = 16 if x_isz == 2 else 8

    tm_cap = _max_tm_for_device()
    ti_cands = [c for c in _TI_CANDIDATES if c <= I and I % c == 0] or [I]
    tm_cands = [c for c in _TM_CANDIDATES if c <= tm_cap and c % sub == 0] or [sub]

    for tm in tm_cands:            # prefer large tm first
        for ti in ti_cands:        # then the largest ti that fits
            if _vmem_footprint(tm, ti, H, x_isz, w_isz, o_isz) <= budget:
                return tm, ti
    return tm_cands[-1], ti_cands[-1]


# --------------------------------------------------------------------------
# One-time weight re-layout (do at load time, NOT per forward call).
# --------------------------------------------------------------------------

def prepare_weights(w_gate_up, w_down, *, ti):
    """Re-layout PyTorch-layout weights for the kernel.

    Args:
      w_gate_up: [2*I, H]  rows ordered [gate; up] (MergedReplicatedLinear).
      w_down:    [H, I]    (ReplicatedLinear).
      ti:        intermediate tile size the kernel will use (must divide I).
    Returns:
      w_gu: [H, 2*I] with columns arranged per I-tile as
            [gate_0 | up_0 | gate_1 | up_1 | ...].
      w_dn: [I, H]   (down weight transposed).
    """
    two_i, H = w_gate_up.shape
    I = two_i // 2
    if I % ti != 0:
        raise ValueError(f"intermediate_size={I} must be divisible by ti={ti}")
    n_tiles = I // ti
    wg = w_gate_up[:I, :].T.reshape(H, n_tiles, ti)   # gate, [H, nI, ti]
    wu = w_gate_up[I:, :].T.reshape(H, n_tiles, ti)   # up,   [H, nI, ti]
    w_gu = jnp.stack([wg, wu], axis=2).reshape(H, 2 * I)
    w_dn = w_down.T                                   # [I, H]
    return w_gu, w_dn


# --------------------------------------------------------------------------
# Kernel.
# --------------------------------------------------------------------------

def _mlp_kernel(x_ref, wgu_ref, wd_ref, o_ref, acc_ref):
    # x_ref:   (tm, H)        token tile (resident across the I axis)
    # wgu_ref: (H, 2*ti)      fused [gate_j | up_j] weight columns for I-tile j
    # wd_ref:  (ti, H)        down-proj weight rows for I-tile j
    # o_ref:   (tm, H)        output tile (written on the last I step)
    # acc_ref: (tm, H) f32    VMEM accumulator, carried across the I axis
    j = pl.program_id(1)

    @pl.when(j == 0)
    def _init():
        acc_ref[...] = jnp.zeros_like(acc_ref)

    ti = wd_ref.shape[0]

    # Fused gate+up projection: one MXU pass over x per I-tile.
    gu = jnp.dot(x_ref[...], wgu_ref[...], preferred_element_type=jnp.float32)
    gate = gu[:, :ti]
    up = gu[:, ti:]

    # SiluAndMul in f32 on the MXU output (EUP sigmoid + VPU muls hide under
    # the MXU; no downcast before the activation).
    act = gate * jax.nn.sigmoid(gate) * up

    # Down projection for this I-tile, accumulated in f32.
    acc_ref[...] += jnp.dot(act.astype(wd_ref.dtype), wd_ref[...],
                            preferred_element_type=jnp.float32)

    @pl.when(j == pl.num_programs(1) - 1)
    def _finalize():
        o_ref[...] = acc_ref[...].astype(o_ref.dtype)


# --------------------------------------------------------------------------
# Wrapper.
# --------------------------------------------------------------------------

def deepseek_mlp(x, w_gu, w_dn, *, tm, ti):
    """x: [T, H]; w_gu: [H, 2*I] (prepared); w_dn: [I, H] (prepared)."""
    T, H = x.shape
    I, _ = w_dn.shape
    assert w_gu.shape == (H, 2 * I), "pass weights through prepare_weights()"
    assert I % ti == 0, f"ti={ti} must divide intermediate_size={I}"
    assert ti == I or ti % 128 == 0, "keep ti a multiple of 128 (lane/MXU aligned)"

    x_isz = jnp.dtype(x.dtype).itemsize
    w_isz = jnp.dtype(w_gu.dtype).itemsize
    o_isz = x_isz
    sub = 16 if x_isz == 2 else 8

    # Token tile: clamp to T; when it actually tiles T keep it a multiple of
    # the sublane-packing factor (16 rows for 2-byte dtypes, 8 for 4-byte).
    tm = max(1, min(tm, T))
    if tm < T and tm % sub != 0:
        tm = max(sub, (tm // sub) * sub)

    # Megacore coverage for decode / small T on 2-TensorCore parts (v7x):
    # ensure the "parallel" token axis has at least two entries.
    if _is_multi_tc_device() and T > 2 * sub and pl.cdiv(T, tm) == 1:
        half = (((T + 1) // 2) + sub - 1) // sub * sub
        if half < T:
            tm = half

    n_tok = pl.cdiv(T, tm)
    n_i = I // ti
    grid = (n_tok, n_i)

    # VMEM sizing: actual footprint (double-buffered tiles + f32 acc, no extra
    # 2x) capped at ~85% of the physical per-core VMEM capacity.
    footprint = _vmem_footprint(tm, ti, H, x_isz, w_isz, o_isz)
    cap = int(0.85 * _vmem_capacity_bytes())
    vmem_limit = int(min(max(footprint + (8 << 20), 32 << 20), cap))

    # Cost estimate: weights are re-streamed once per token tile (their
    # index_maps depend only on j).
    flops = 2 * T * H * (2 * I) + 2 * T * I * H       # gate/up GEMM + down GEMM
    weight_bytes = (H * 2 * I + I * H) * w_isz
    bytes_accessed = T * H * x_isz + n_tok * weight_bytes + T * H * o_isz
    cost = pl.CostEstimate(flops=flops, transcendentals=T * I,
                           bytes_accessed=bytes_accessed)

    return pl.pallas_call(
        _mlp_kernel,
        out_shape=jax.ShapeDtypeStruct((T, H), x.dtype),
        grid_spec=pltpu.PrefetchScalarGridSpec(
            num_scalar_prefetch=0,
            grid=grid,
            in_specs=[
                pl.BlockSpec((tm, H), lambda i, j: (i, 0)),      # x tile
                pl.BlockSpec((H, 2 * ti), lambda i, j: (0, j)),  # [gate_j|up_j]
                pl.BlockSpec((ti, H), lambda i, j: (j, 0)),      # down tile
            ],
            out_specs=pl.BlockSpec((tm, H), lambda i, j: (i, 0)),
            scratch_shapes=[pltpu.VMEM((tm, H), jnp.float32)],
        ),
        compiler_params=pltpu.CompilerParams(
            dimension_semantics=("parallel", "arbitrary"),
            vmem_limit_bytes=vmem_limit,
        ),
        cost_estimate=cost,
    )(x, w_gu, w_dn)


def deepseek_mlp_ref(x, w_gate_up, w_down):
    """Pure-JAX reference in the original PyTorch weight layout."""
    I = w_gate_up.shape[0] // 2
    gate_up = x @ w_gate_up.T
    gate, up = gate_up[:, :I], gate_up[:, I:]
    h = gate * jax.nn.sigmoid(gate) * up
    return h @ w_down.T


# TODO(synk): the quantized (int8 + per-token dynamic scale) path and the
# distributed all-to-all / reduce-scatter group setup of the original module
# are not translated; only the replicated, unquantized forward math is.


if __name__ == "__main__":
    # Small shapes consistent with the module (tokens, hidden, intermediate),
    # bf16 production dtype for activations and weights.
    T, H, I = 256, 256, 512
    dtype = jnp.bfloat16

    key = jax.random.PRNGKey(0)
    kx, kg, kd = jax.random.split(key, 3)
    x = jax.random.normal(kx, (T, H), dtype=jnp.float32).astype(dtype)
    # PyTorch layouts: gate_up_proj.weight [2*I, H]; down_proj.weight [H, I].
    w_gate_up = (jax.random.normal(kg, (2 * I, H), dtype=jnp.float32) * 0.02
                 ).astype(dtype)
    w_down = (jax.random.normal(kd, (H, I), dtype=jnp.float32) * 0.02
              ).astype(dtype)

    ref = deepseek_mlp_ref(x.astype(jnp.float32),
                           w_gate_up.astype(jnp.float32),
                           w_down.astype(jnp.float32))

    # (a) Explicit small tiles: exercises both the token tiling (2 token
    #     tiles) and the I-axis accumulation path (2 I-tiles).
    ti = 256
    w_gu, w_dn = prepare_weights(w_gate_up, w_down, ti=ti)   # one-time re-layout
    run = jax.jit(functools.partial(deepseek_mlp, tm=128, ti=ti))
    out = jax.block_until_ready(run(x, w_gu, w_dn))
    assert out.shape == (T, H)
    err = float(jnp.max(jnp.abs(out.astype(jnp.float32) - ref)))
    assert err < 5e-2, f"explicit-tile mismatch vs reference, max abs err {err}"

    # (b) Hardware-aware auto tile selection (production path).
    tm_a, ti_a = select_tiles(T, H, I, x_dtype=dtype, w_dtype=dtype)
    w_gu_a, w_dn_a = prepare_weights(w_gate_up, w_down, ti=ti_a)
    run_a = jax.jit(functools.partial(deepseek_mlp, tm=tm_a, ti=ti_a))
    out_a = jax.block_until_ready(run_a(x, w_gu_a, w_dn_a))
    err_a = float(jnp.max(jnp.abs(out_a.astype(jnp.float32) - ref)))
    assert err_a < 5e-2, f"auto-tile mismatch vs reference, max abs err {err_a}"

    print("KERNEL_OK")
</pallas_src>

<mosaic_0001>
module attributes {stable_mosaic.version = 11 : i64} {
  func.func @_mlp_kernel(%arg0: i32, %arg1: i32, %arg2: memref<128x256xbf16, #tpu.memory_space<vmem>>, %arg3: memref<256x512xbf16, #tpu.memory_space<vmem>>, %arg4: memref<256x256xbf16, #tpu.memory_space<vmem>>, %arg5: memref<128x256xbf16, #tpu.memory_space<vmem>>, %arg6: memref<128x256xf32, #tpu.memory_space<vmem>>) attributes {dimension_semantics = [#tpu.dimension_semantics<parallel>, #tpu.dimension_semantics<arbitrary>], iteration_bounds = array<i64: 2, 2>, scalar_prefetch = 0 : i64, scratch_operands = 1 : i64, tpu.core_type = #tpu.core_type<tc>, window_params = [{transform_indices = @transform_0, window_bounds = array<i64: 128, 256>}, {transform_indices = @transform_1, window_bounds = array<i64: 256, 512>}, {transform_indices = @transform_2, window_bounds = array<i64: 256, 256>}, {transform_indices = @transform_3, window_bounds = array<i64: 128, 256>}]} {
    %c0_i32 = arith.constant 0 : i32
    %0 = arith.cmpi eq, %arg1, %c0_i32 : i32
    %1 = arith.extui %0 : i1 to i32
    %c0_i32_0 = arith.constant 0 : i32
    %2 = arith.cmpi ne, %1, %c0_i32_0 : i32
    scf.if %2 {
      %cst_13 = arith.constant 0.000000e+00 : f32
      %24 = vector.broadcast %cst_13 : f32 to vector<128x256xf32>
      %c0_14 = arith.constant 0 : index
      %c0_15 = arith.constant 0 : index
      %25 = vector.load %arg6[%c0_14, %c0_15] : memref<128x256xf32, #tpu.memory_space<vmem>>, vector<128x256xf32>
      tpu.vector_store %arg6[%c0_14, %c0_15], %24 {strides = array<i32>} : memref<128x256xf32, #tpu.memory_space<vmem>>, vector<128x256xf32>,
    } else {
    }
    %c0 = arith.constant 0 : index
    %c0_1 = arith.constant 0 : index
    %3 = vector.load %arg2[%c0, %c0_1] : memref<128x256xbf16, #tpu.memory_space<vmem>>, vector<128x256xbf16>
    %c0_2 = arith.constant 0 : index
    %c0_3 = arith.constant 0 : index
    %4 = vector.load %arg3[%c0_2, %c0_3] : memref<256x512xbf16, #tpu.memory_space<vmem>>, vector<256x512xbf16>
    %cst = arith.constant dense<0.000000e+00> : vector<128x512xf32>
    %5 = tpu.matmul %3, %4, %cst {dimension_numbers = #tpu.dot_dimension_numbers<[1], [0], [0], [1], [0, 0, 1, 1], [], []>} : vector<128x256xbf16>, vector<256x512xbf16>, vector<128x512xf32> -> vector<128x512xf32>
    %6 = vector.extract_strided_slice %5 {offsets = [0, 0], sizes = [128, 256], strides = [1, 1]} : vector<128x512xf32> to vector<128x256xf32>
    %7 = vector.extract_strided_slice %5 {offsets = [0, 256], sizes = [128, 256], strides = [1, 1]} : vector<128x512xf32> to vector<128x256xf32>
    %8 = arith.negf %6 : vector<128x256xf32>
    %9 = math.exp %8 : vector<128x256xf32>
    %cst_4 = arith.constant 1.000000e+00 : f32
    %10 = vector.broadcast %cst_4 : f32 to vector<128x256xf32>
    %11 = arith.addf %10, %9 : vector<128x256xf32>
    %12 = arith.divf %10, %11 : vector<128x256xf32>
    %13 = arith.mulf %6, %12 : vector<128x256xf32>
    %14 = arith.mulf %13, %7 : vector<128x256xf32>
    %c0_5 = arith.constant 0 : index
    %c0_6 = arith.constant 0 : index
    %15 = vector.load %arg6[%c0_5, %c0_6] : memref<128x256xf32, #tpu.memory_space<vmem>>, vector<128x256xf32>
    %16 = arith.truncf %14 : vector<128x256xf32> to vector<128x256xbf16>
    %c0_7 = arith.constant 0 : index
    %c0_8 = arith.constant 0 : index
    %17 = vector.load %arg4[%c0_7, %c0_8] : memref<256x256xbf16, #tpu.memory_space<vmem>>, vector<256x256xbf16>
    %cst_9 = arith.constant dense<0.000000e+00> : vector<128x256xf32>
    %18 = tpu.matmul %16, %17, %cst_9 {dimension_numbers = #tpu.dot_dimension_numbers<[1], [0], [0], [1], [0, 0, 1, 1], [], []>} : vector<128x256xbf16>, vector<256x256xbf16>, vector<128x256xf32> -> vector<128x256xf32>
    %19 = arith.addf %15, %18 : vector<128x256xf32>
    %c0_10 = arith.constant 0 : index
    %c0_11 = arith.constant 0 : index
    %20 = vector.load %arg6[%c0_10, %c0_11] : memref<128x256xf32, #tpu.memory_space<vmem>>, vector<128x256xf32>
    tpu.vector_store %arg6[%c0_10, %c0_11], %19 {strides = array<i32>} : memref<128x256xf32, #tpu.memory_space<vmem>>, vector<128x256xf32>,
    %c1_i32 = arith.constant 1 : i32
    %21 = arith.cmpi eq, %arg1, %c1_i32 : i32
    %22 = arith.extui %21 : i1 to i32
    %c0_i32_12 = arith.constant 0 : i32
    %23 = arith.cmpi ne, %22, %c0_i32_12 : i32
    scf.if %23 {
      %c0_13 = arith.constant 0 : index
      %c0_14 = arith.constant 0 : index
      %24 = vector.load %arg6[%c0_13, %c0_14] : memref<128x256xf32, #tpu.memory_space<vmem>>, vector<128x256xf32>
      %25 = arith.truncf %24 : vector<128x256xf32> to vector<128x256xbf16>
      %c0_15 = arith.constant 0 : index
      %c0_16 = arith.constant 0 : index
      %26 = vector.load %arg5[%c0_15, %c0_16] : memref<128x256xbf16, #tpu.memory_space<vmem>>, vector<128x256xbf16>
      tpu.vector_store %arg5[%c0_15, %c0_16], %25 {strides = array<i32>} : memref<128x256xbf16, #tpu.memory_space<vmem>>, vector<128x256xbf16>,
    } else {
    }
    return
  }
  func.func @transform_0(%arg0: i32, %arg1: i32) -> (i32, i32) {
    %c0_i32 = arith.constant 0 : i32
    %c0_i32_0 = arith.constant 0 : i32
    return %arg0, %c0_i32 : i32, i32
  }
  func.func @transform_1(%arg0: i32, %arg1: i32) -> (i32, i32) {
    %c0_i32 = arith.constant 0 : i32
    %c0_i32_0 = arith.constant 0 : i32
    return %c0_i32, %arg1 : i32, i32
  }
  func.func @transform_2(%arg0: i32, %arg1: i32) -> (i32, i32) {
    %c0_i32 = arith.constant 0 : i32
    %c0_i32_0 = arith.constant 0 : i32
    return %arg1, %c0_i32 : i32, i32
  }
  func.func @transform_3(%arg0: i32, %arg1: i32) -> (i32, i32) {
    %c0_i32 = arith.constant 0 : i32
    %c0_i32_0 = arith.constant 0 : i32
    return %arg0, %c0_i32 : i32, i32
  }
}

</mosaic_0001>

<llo_original>
// kernel: deepseek_mlp.1
$region0: #{deepseek_mlp.1}
  #allocation0 [shape = 'u32[]', space=smem, size = 0x4, offset = 0x4, fixed_abs, tag = 'smem constant byte address 0x4 - core index']
  #allocation1 [shape = 'u32[144,128]{1,0:T(1,128)}', space=vmem, size = 0x12000, scoped, tag = 'internal scratch']
  #allocation2 [shape = 'f32[128,256]{1,0:T(8,128)}', space=vmem, size = 0x20000, scoped, tag = 'scratch operand']
  %s0 = inlined_call_operand.hbm [shape: bf16[256,256], index: 0, kind: input, shape index: {}]
  %s1 = inlined_call_operand.hbm [shape: bf16[256,1024], index: 1, kind: input, shape index: {}]
  %s2 = inlined_call_operand.hbm [shape: bf16[512,256], index: 2, kind: input, shape index: {}]
  %s3 = inlined_call_operand.hbm [shape: bf16[256,256], index: 3, kind: output, shape index: {}]
  %s4 = sld [smem:[#allocation0]]
  $region65: #{deepseek_mlp.1} parent=0
    _
  %s6 = ssub.s32 1, %s4
  %s7 = scalar_select 0, %s6, %s4
  $region1: #{deepseek_mlp.1} parent=0
    #allocation3 [shape = 'u8[131072]{0}', space=vmem, size = 0x20000, scoped, tag = 'input window, operand 0']
    #allocation4 [shape = 's32[2]{0}', space=sflag, size = 0x8, scoped, tag = 'scoped memory for deepseek_mlp.1']
    #allocation5 [shape = 's32[2]{0}', space=sflag, size = 0x8, scoped, tag = 'scoped memory for deepseek_mlp.1']
    #allocation6 [shape = 'u8[524288]{0}', space=vmem, size = 0x80000, scoped, tag = 'input window, operand 1']
    #allocation7 [shape = 's32[2]{0}', space=sflag, size = 0x8, scoped, tag = 'scoped memory for deepseek_mlp.1']
    #allocation8 [shape = 'u8[262144]{0}', space=vmem, size = 0x40000, scoped, tag = 'input window, operand 2']
    #allocation9 [shape = 'u8[131072]{0}', space=vmem, size = 0x20000, scoped, tag = 'output window, operand 0']
    %8 = vsyncpa [#allocation4], 0
    %s9 = scalar_lea.sflag [#allocation4], 1
    %10 = vsyncpa %s9, 0
    %11 = vsyncpa [#allocation7], 0
    %s12 = scalar_lea.sflag [#allocation7], 1
    %13 = vsyncpa %s12, 0
    %14 = vsyncpa [#allocation5], 0
    %s15 = scalar_lea.sflag [#allocation5], 1
    %16 = vsyncpa %s15, 0
    loop: start=0, step=1, limit=6
    $region2: #{deepseek_mlp.1} parent=1 // loop_pre_header
      _
    $region3: #{deepseek_mlp.1} parent=1 // loop_header
      %s18 = sphi 0, %s22
      %p19 = scmp.ge.s32.totalorder %s18, 6
      %s25 = sphi 0, %s37
      %s26 = sphi 0, %s33
      %s27 = sphi 0, %s25
      %s28 = sphi 0, %s26
      %s29 = sphi 0, %s27
      %s30 = sphi 0, %s28
      %s40 = sphi 0, %s42
      %s43 = sphi 0, %s40
      %s44 = sphi 0, %s43
      %s60 = sphi 0, %s44
      %s66 = sphi 0, %s68
      %s69 = sphi 0, %s66
      %s70 = sphi 0, %s69
      %s86 = sphi 0, %s70
      %s92 = sphi 0, %s94
      %s95 = sphi 0, %s92
      %s96 = sphi 0, %s95
      %s112 = sphi 0, %s96
      %s118 = sphi 0, %s120
      %s121 = sphi 0, %s118
      %s122 = sphi 0, %s121
      %s138 = sphi 0, %s122
    $region4: #{deepseek_mlp.1} parent=1 // loop_header_branch
      %21 = sbr.rel (%p19) target = $region8
    $region5: #{deepseek_mlp.1} parent=1 // loop_body
      %s23 = ssub.s32 %s18, 1
      %s24 = ssub.s32 %s18, 2
      %s31 = sadd.s32 1, %s26
      %p32 = scmp.ge.s32.totalorder %s31, 2
      %s33 = scalar_select %p32, 0, %s31
      %s34 = sadd.s32 1, %s25
      %s35 = scalar_select %p32, %s34, %s25
      %p36 = scmp.ge.s32.totalorder %s35, 2
      %s37 = scalar_select %p36, 0, %s35
      %s38 = ssub.s32 %s25, %s37
      %p39 = scmp.eq.s32.totalorder %s38, 0
      %s41 = sadd.s32 %s40, 1
      %s42 = scalar_select %p39, %s40, %s41
      %p45 = pneg %p39
      %p46 = scmp.eq.s32.totalorder %s18, 3
      %p47 = por %p45, %p46
      %p48 = scmp.ne.s32.totalorder %s40, %s43
      %p49 = scmp.eq.s32.totalorder %s18, 0
      %p50 = por %p48, %p49
      %p51 = scmp.ne.s32.totalorder %s40, %s43
      %p52 = scmp.eq.s32.totalorder %s23, 3
      %p53 = por %p51, %p52
      %p54 = scmp.ne.s32.totalorder %s43, %s44
      %p55 = scmp.eq.s32.totalorder %s23, 0
      %p56 = por %p54, %p55
      %p57 = scmp.ne.s32.totalorder %s43, %s44
      %p58 = scmp.eq.s32.totalorder %s24, 3
      %p59 = por %p57, %p58
      %p61 = scmp.ne.s32.totalorder %s44, %s60
      %p62 = scmp.eq.s32.totalorder %s24, 0
      %p63 = por %p61, %p62
      %s64 = ssub.s32 %s26, %s33
      %p65 = scmp.eq.s32.totalorder %s64, 0
      %s67 = sadd.s32 %s66, 1
      %s68 = scalar_select %p65, %s66, %s67
      %p71 = pneg %p65
      %p72 = scmp.eq.s32.totalorder %s18, 3
      %p73 = por %p71, %p72
      %p74 = scmp.ne.s32.totalorder %s66, %s69
      %p75 = scmp.eq.s32.totalorder %s18, 0
      %p76 = por %p74, %p75
      %p77 = scmp.ne.s32.totalorder %s66, %s69
      %p78 = scmp.eq.s32.totalorder %s23, 3
      %p79 = por %p77, %p78
      %p80 = scmp.ne.s32.totalorder %s69, %s70
      %p81 = scmp.eq.s32.totalorder %s23, 0
      %p82 = por %p80, %p81
      %p83 = scmp.ne.s32.totalorder %s69, %s70
      %p84 = scmp.eq.s32.totalorder %s24, 3
      %p85 = por %p83, %p84
      %p87 = scmp.ne.s32.totalorder %s70, %s86
      %p88 = scmp.eq.s32.totalorder %s24, 0
      %p89 = por %p87, %p88
      %s90 = ssub.s32 %s26, %s33
      %p91 = scmp.eq.s32.totalorder %s90, 0
      %s93 = sadd.s32 %s92, 1
      %s94 = scalar_select %p91, %s92, %s93
      %p97 = pneg %p91
      %p98 = scmp.eq.s32.totalorder %s18, 3
      %p99 = por %p97, %p98
      %p100 = scmp.ne.s32.totalorder %s92, %s95
      %p101 = scmp.eq.s32.totalorder %s18, 0
      %p102 = por %p100, %p101
      %p103 = scmp.ne.s32.totalorder %s92, %s95
      %p104 = scmp.eq.s32.totalorder %s23, 3
      %p105 = por %p103, %p104
      %p106 = scmp.ne.s32.totalorder %s95, %s96
      %p107 = scmp.eq.s32.totalorder %s23, 0
      %p108 = por %p106, %p107
      %p109 = scmp.ne.s32.totalorder %s95, %s96
      %p110 = scmp.eq.s32.totalorder %s24, 3
      %p111 = por %p109, %p110
      %p113 = scmp.ne.s32.totalorder %s96, %s112
      %p114 = scmp.eq.s32.totalorder %s24, 0
      %p115 = por %p113, %p114
      %s116 = ssub.s32 %s25, %s37
      %p117 = scmp.eq.s32.totalorder %s116, 0
      %s119 = sadd.s32 %s118, 1
      %s120 = scalar_select %p117, %s118, %s119
      %p123 = pneg %p117
      %p124 = scmp.eq.s32.totalorder %s18, 3
      %p125 = por %p123, %p124
      %p126 = scmp.ne.s32.totalorder %s118, %s121
      %p127 = scmp.eq.s32.totalorder %s18, 0
      %p128 = por %p126, %p127
      %p129 = scmp.ne.s32.totalorder %s118, %s121
      %p130 = scmp.eq.s32.totalorder %s23, 3
      %p131 = por %p129, %p130
      %p132 = scmp.ne.s32.totalorder %s121, %s122
      %p133 = scmp.eq.s32.totalorder %s23, 0
      %p134 = por %p132, %p133
      %p135 = scmp.ne.s32.totalorder %s121, %s122
      %p136 = scmp.eq.s32.totalorder %s24, 3
      %p137 = por %p135, %p136
      %p139 = scmp.ne.s32.totalorder %s122, %s138
      %p140 = scmp.eq.s32.totalorder %s24, 0
      %p141 = por %p139, %p140
      %p142 = scmp.le.s32.totalorder 1, %s18
      %p143 = scmp.lt.s32.totalorder %s18, 5
      %p144 = pnand %p142, %p143
      %p145 = pneg %p144
      // Predicated region
      $region9: #{deepseek_mlp.1} parent=5 // pred_check
        _
      $region10: #{deepseek_mlp.1} parent=5 // pred_check_branch
        %147 = sbr.rel (%p144) target = $region12
      $region11: #{deepseek_mlp.1} parent=5 // pred_region
        %s148 = ssub.s32 %s18, 1
      $region12: #{deepseek_mlp.1} parent=5 // pred_fallthru
        _
      %p149 = scmp.lt.s32.totalorder %s18, 4
      // Predicated region
      $region13: #{deepseek_mlp.1} parent=5 // pred_check
        %p150 = pneg %p149
      $region14: #{deepseek_mlp.1} parent=5 // pred_check_branch
        %152 = sbr.rel (%p150) target = $region16
      $region15: #{deepseek_mlp.1} parent=5 // pred_region
        // Predicated region
        $region17: #{deepseek_mlp.1} parent=15 // pred_check
          %p153 = pneg %p50
        $region18: #{deepseek_mlp.1} parent=15 // pred_check_branch
          %155 = sbr.rel (%p153) target = $region20
        $region19: #{deepseek_mlp.1} parent=15 // pred_region
          %s156 = sand.u32 %s40, 1
          %s157 = scalar_lea.sflag [#allocation4], %s156
          %s158 = sand.u32 %s40, 1
          %s159 = smul.addr %s158, 128
          %s160 = scalar_lea.vmem [#allocation3], %s159
          %s161 = smul.u32 16, %s25
          %s163 = ssub.s32 2048, 2048
          %164 = vsyncadd %s157, %s163
          %s165 = smul.addr %s161, 2
          %s166 = smul.addr %s165, 64
          %s167 = scalar_lea.hbm %s0, %s166
          %s168 = sshll.u32 %s160, 4
          %s169 = int_to_ptr.vmem [resolvable:$true] %s168
          %174 = dma.hbm_to_vmem [thread:$0]  %s167, 2048, %s169, %s157, 128, 128, 8
        $region20: #{deepseek_mlp.1} parent=15 // pred_fallthru
          _
        // Predicated region
        $region21: #{deepseek_mlp.1} parent=15 // pred_check
          %p175 = pneg %p76
        $region22: #{deepseek_mlp.1} parent=15 // pred_check_branch
          %177 = sbr.rel (%p175) target = $region24
        $region23: #{deepseek_mlp.1} parent=15 // pred_region
          %s178 = sand.u32 %s18, 1
          %s179 = scalar_lea.sflag [#allocation7], %s178
          %s180 = sand.u32 %s66, 1
          %s181 = smul.addr %s180, 512
          %s182 = scalar_lea.vmem [#allocation6], %s181
          %s183 = smul.u32 4, %s26
          %s185 = ssub.s32 8192, 8192
          %186 = vsyncadd %s179, %s185
          %s187 = smul.addr %s183, 64
          %s188 = scalar_lea.hbm %s1, %s187
          %s189 = sshll.u32 %s182, 4
          %s190 = int_to_ptr.vmem [resolvable:$true] %s189
          %195 = dma.hbm_to_vmem [thread:$0]  %s188, 8192, %s190, %s179, 512, 256, 16
        $region24: #{deepseek_mlp.1} parent=15 // pred_fallthru
          _
        // Predicated region
        $region25: #{deepseek_mlp.1} parent=15 // pred_check
          %p196 = pneg %p102
        $region26: #{deepseek_mlp.1} parent=15 // pred_check_branch
          %198 = sbr.rel (%p196) target = $region28
        $region27: #{deepseek_mlp.1} parent=15 // pred_region
          %s199 = sand.u32 %s18, 1
          %s200 = scalar_lea.sflag [#allocation7], %s199
          %s201 = sand.u32 %s92, 1
          %s202 = smul.addr %s201, 256
          %s203 = scalar_lea.vmem [#allocation8], %s202
          %s204 = smul.u32 32, %s26
          %s206 = ssub.s32 4096, 4096
          %207 = vsyncadd %s200, %s206
          %s208 = smul.addr %s204, 2
          %s209 = smul.addr %s208, 64
          %s210 = scalar_lea.hbm %s2, %s209
          %s211 = sshll.u32 %s203, 4
          %s212 = int_to_ptr.vmem [resolvable:$true] %s211
          %217 = dma.hbm_to_vmem [thread:$0]  %s210, 4096, %s212, %s200, 128, 128, 8
        $region28: #{deepseek_mlp.1} parent=15 // pred_fallthru
          _
      $region16: #{deepseek_mlp.1} parent=5 // pred_fallthru
        _
      %p218 = scmp.le.s32.totalorder 1, %s18
      %p219 = scmp.lt.s32.totalorder %s18, 5
      %p220 = pnand %p218, %p219
      %p221 = pneg %p220
      // Predicated region
      $region29: #{deepseek_mlp.1} parent=5 // pred_check
        _
      $region30: #{deepseek_mlp.1} parent=5 // pred_check_branch
        %223 = sbr.rel (%p220) target = $region32
      $region31: #{deepseek_mlp.1} parent=5 // pred_region
        %s224 = ssub.s32 %s18, 1
        %s225 = sand.u32 %s43, 1
        %s226 = scalar_lea.sflag [#allocation4], %s225
        %s227 = sand.u32 %s43, 1
        %s228 = smul.addr %s227, 128
        %s229 = scalar_lea.vmem [#allocation3], %s228
        // Predicated region
        $region33: #{deepseek_mlp.1} parent=31 // pred_check
          %p230 = pneg %p56
        $region34: #{deepseek_mlp.1} parent=31 // pred_check_branch
          %232 = sbr.rel (%p230) target = $region36
        $region35: #{deepseek_mlp.1} parent=31 // pred_region
          %233 = dma.done %s226, 2048
        $region36: #{deepseek_mlp.1} parent=31 // pred_fallthru
          _
        %s234 = sand.u32 %s23, 1
        %s235 = scalar_lea.sflag [#allocation7], %s234
        %s236 = sand.u32 %s69, 1
        %s237 = smul.addr %s236, 512
        %s238 = scalar_lea.vmem [#allocation6], %s237
        // Predicated region
        $region37: #{deepseek_mlp.1} parent=31 // pred_check
          %p239 = pneg %p82
        $region38: #{deepseek_mlp.1} parent=31 // pred_check_branch
          %241 = sbr.rel (%p239) target = $region40
        $region39: #{deepseek_mlp.1} parent=31 // pred_region
          %242 = dma.done %s235, 8192
        $region40: #{deepseek_mlp.1} parent=31 // pred_fallthru
          _
        %s243 = sand.u32 %s23, 1
        %s244 = scalar_lea.sflag [#allocation7], %s243
        %s245 = sand.u32 %s95, 1
        %s246 = smul.addr %s245, 256
        %s247 = scalar_lea.vmem [#allocation8], %s246
        // Predicated region
        $region41: #{deepseek_mlp.1} parent=31 // pred_check
          %p248 = pneg %p108
        $region42: #{deepseek_mlp.1} parent=31 // pred_check_branch
          %250 = sbr.rel (%p248) target = $region44
        $region43: #{deepseek_mlp.1} parent=31 // pred_region
          %251 = dma.done %s244, 4096
        $region44: #{deepseek_mlp.1} parent=31 // pred_fallthru
          _
        %s252 = sand.u32 %s43, 1
        %s253 = scalar_lea.sflag [#allocation4], %s252
        %s254 = sand.u32 %s43, 1
        %s255 = smul.addr %s254, 128
        %s256 = scalar_lea.vmem [#allocation3], %s255
        %p257 = pneg %p56
        %p258 = pneg %p53
        %s259 = sand.u32 %s23, 1
        %s260 = scalar_lea.sflag [#allocation7], %s259
        %s261 = sand.u32 %s69, 1
        %s262 = smul.addr %s261, 512
        %s263 = scalar_lea.vmem [#allocation6], %s262
        %p264 = pneg %p82
        %p265 = pneg %p79
        %s266 = sand.u32 %s23, 1
        %s267 = scalar_lea.sflag [#allocation7], %s266
        %s268 = sand.u32 %s95, 1
        %s269 = smul.addr %s268, 256
        %s270 = scalar_lea.vmem [#allocation8], %s269
        %p271 = pneg %p108
        %p272 = pneg %p105
        %p273 = pneg %p134
        %p274 = pneg %p131
        %s275 = sand.u32 %s121, 1
        %s276 = scalar_lea.sflag [#allocation5], %s275
        %s277 = sand.u32 %s121, 1
        %s278 = smul.addr %s277, 128
        %s279 = scalar_lea.vmem [#allocation9], %s278
        %s280 = smul.u32 16, %s27
        %s281 = smul.u32 4, %s28
        %s282 = smul.u32 32, %s28
        %s283 = smul.u32 16, %s27
        %p284 = scmp.eq.s32.totalorder %s28, 0
        // Predicated region
        $region45: #{deepseek_mlp.1} parent=31 // pred_check
          %p285 = pneg %p284
        $region46: #{deepseek_mlp.1} parent=31 // pred_check_branch
          %287 = sbr.rel (%p285) target = $region48
        $region47: #{deepseek_mlp.1} parent=31 // pred_region
          %288 = vst [vmem:[#allocation2] sm:$0xff] 0.0
          %289 = vst [vmem:[#allocation2 + $0x8] sm:$0xff] 0.0
          %290 = vst [vmem:[#allocation2 + $0x10] sm:$0xff] 0.0
          %291 = vst [vmem:[#allocation2 + $0x18] sm:$0xff] 0.0
          %292 = vst [vmem:[#allocation2 + $0x20] sm:$0xff] 0.0
          %293 = vst [vmem:[#allocation2 + $0x28] sm:$0xff] 0.0
          %294 = vst [vmem:[#allocation2 + $0x30] sm:$0xff] 0.0
          %295 = vst [vmem:[#allocation2 + $0x38] sm:$0xff] 0.0
          %296 = vst [vmem:[#allocation2 + $0x40] sm:$0xff] 0.0
          %297 = vst [vmem:[#allocation2 + $0x48] sm:$0xff] 0.0
          %298 = vst [vmem:[#allocation2 + $0x50] sm:$0xff] 0.0
          %299 = vst [vmem:[#allocation2 + $0x58] sm:$0xff] 0.0
          %300 = vst [vmem:[#allocation2 + $0x60] sm:$0xff] 0.0
          %301 = vst [vmem:[#allocation2 + $0x68] sm:$0xff] 0.0
          %302 = vst [vmem:[#allocation2 + $0x70] sm:$0xff] 0.0
          %303 = vst [vmem:[#allocation2 + $0x78] sm:$0xff] 0.0
          %304 = vst [vmem:[#allocation2 + $0x80] sm:$0xff] 0.0
          %305 = vst [vmem:[#allocation2 + $0x88] sm:$0xff] 0.0
          %306 = vst [vmem:[#allocation2 + $0x90] sm:$0xff] 0.0
          %307 = vst [vmem:[#allocation2 + $0x98] sm:$0xff] 0.0
          %308 = vst [vmem:[#allocation2 + $0xa0] sm:$0xff] 0.0
          %309 = vst [vmem:[#allocation2 + $0xa8] sm:$0xff] 0.0
          %310 = vst [vmem:[#allocation2 + $0xb0] sm:$0xff] 0.0
          %311 = vst [vmem:[#allocation2 + $0xb8] sm:$0xff] 0.0
          %312 = vst [vmem:[#allocation2 + $0xc0] sm:$0xff] 0.0
          %313 = vst [vmem:[#allocation2 + $0xc8] sm:$0xff] 0.0
          %314 = vst [vmem:[#allocation2 + $0xd0] sm:$0xff] 0.0
          %315 = vst [vmem:[#allocation2 + $0xd8] sm:$0xff] 0.0
          %316 = vst [vmem:[#allocation2 + $0xe0] sm:$0xff] 0.0
          %317 = vst [vmem:[#allocation2 + $0xe8] sm:$0xff] 0.0
          %318 = vst [vmem:[#allocation2 + $0xf0] sm:$0xff] 0.0
          %319 = vst [vmem:[#allocation2 + $0xf8] sm:$0xff] 0.0
        $region48: #{deepseek_mlp.1} parent=31 // pred_fallthru
          _
        %v320 = vld [vmem:[%s229] sm:$0xff]
        %v321 = vld [vmem:[%s229 + $0x8] sm:$0xff]
        %v322 = vld [vmem:[%s229 + $0x10] sm:$0xff]
        %v323 = vld [vmem:[%s229 + $0x18] sm:$0xff]
        %v324 = vld [vmem:[%s229 + $0x20] sm:$0xff]
        %v325 = vld [vmem:[%s229 + $0x28] sm:$0xff]
        %v326 = vld [vmem:[%s229 + $0x30] sm:$0xff]
        %v327 = vld [vmem:[%s229 + $0x38] sm:$0xff]
        %v328 = vld [vmem:[%s229 + $0x40] sm:$0xff]
        %v329 = vld [vmem:[%s229 + $0x48] sm:$0xff]
        %v330 = vld [vmem:[%s229 + $0x50] sm:$0xff]
        %v331 = vld [vmem:[%s229 + $0x58] sm:$0xff]
        %v332 = vld [vmem:[%s229 + $0x60] sm:$0xff]
        %v333 = vld [vmem:[%s229 + $0x68] sm:$0xff]
        %v334 = vld [vmem:[%s229 + $0x70] sm:$0xff]
        %v335 = vld [vmem:[%s229 + $0x78] sm:$0xff]
        %v336 = vld [vmem:[%s238] sm:$0xff]
        %v337 = vld [vmem:[%s238 + $0x8] sm:$0xff]
        %v338 = vld [vmem:[%s238 + $0x10] sm:$0xff]
        %v339 = vld [vmem:[%s238 + $0x18] sm:$0xff]
        %v340 = vld [vmem:[%s238 + $0x20] sm:$0xff]
        %v341 = vld [vmem:[%s238 + $0x28] sm:$0xff]
        %v342 = vld [vmem:[%s238 + $0x30] sm:$0xff]
        %v343 = vld [vmem:[%s238 + $0x38] sm:$0xff]
        %v344 = vld [vmem:[%s238 + $0x40] sm:$0xff]
        %v345 = vld [vmem:[%s238 + $0x48] sm:$0xff]
        %v346 = vld [vmem:[%s238 + $0x50] sm:$0xff]
        %v347 = vld [vmem:[%s238 + $0x58] sm:$0xff]
        %v348 = vld [vmem:[%s238 + $0x60] sm:$0xff]
        %v349 = vld [vmem:[%s238 + $0x68] sm:$0xff]
        %v350 = vld [vmem:[%s238 + $0x70] sm:$0xff]
        %v351 = vld [vmem:[%s238 + $0x78] sm:$0xff]
        %v352 = vld [vmem:[%s238 + $0x80] sm:$0xff]
        %v353 = vld [vmem:[%s238 + $0x88] sm:$0xff]
        %v354 = vld [vmem:[%s238 + $0x90] sm:$0xff]
        %v355 = vld [vmem:[%s238 + $0x98] sm:$0xff]
        %v356 = vld [vmem:[%s238 + $0xa0] sm:$0xff]
        %v357 = vld [vmem:[%s238 + $0xa8] sm:$0xff]
        %v358 = vld [vmem:[%s238 + $0xb0] sm:$0xff]
        %v359 = vld [vmem:[%s238 + $0xb8] sm:$0xff]
        %v360 = vld [vmem:[%s238 + $0xc0] sm:$0xff]
        %v361 = vld [vmem:[%s238 + $0xc8] sm:$0xff]
        %v362 = vld [vmem:[%s238 + $0xd0] sm:$0xff]
        %v363 = vld [vmem:[%s238 + $0xd8] sm:$0xff]
        %v364 = vld [vmem:[%s238 + $0xe0] sm:$0xff]
        %v365 = vld [vmem:[%s238 + $0xe8] sm:$0xff]
        %v366 = vld [vmem:[%s238 + $0xf0] sm:$0xff]
        %v367 = vld [vmem:[%s238 + $0xf8] sm:$0xff]
        %v368 = vld [vmem:[%s238 + $0x100] sm:$0xff]
        %v369 = vld [vmem:[%s238 + $0x108] sm:$0xff]
        %v370 = vld [vmem:[%s238 + $0x110] sm:$0xff]
        %v371 = vld [vmem:[%s238 + $0x118] sm:$0xff]
        %v372 = vld [vmem:[%s238 + $0x120] sm:$0xff]
        %v373 = vld [vmem:[%s238 + $0x128] sm:$0xff]
        %v374 = vld [vmem:[%s238 + $0x130] sm:$0xff]
        %v375 = vld [vmem:[%s238 + $0x138] sm:$0xff]
        %v376 = vld [vmem:[%s238 + $0x140] sm:$0xff]
        %v377 = vld [vmem:[%s238 + $0x148] sm:$0xff]
        %v378 = vld [vmem:[%s238 + $0x150] sm:$0xff]
        %v379 = vld [vmem:[%s238 + $0x158] sm:$0xff]
        %v380 = vld [vmem:[%s238 + $0x160] sm:$0xff]
        %v381 = vld [vmem:[%s238 + $0x168] sm:$0xff]
        %v382 = vld [vmem:[%s238 + $0x170] sm:$0xff]
        %v383 = vld [vmem:[%s238 + $0x178] sm:$0xff]
        %v384 = vld [vmem:[%s238 + $0x180] sm:$0xff]
        %v385 = vld [vmem:[%s238 + $0x188] sm:$0xff]
        %v386 = vld [vmem:[%s238 + $0x190] sm:$0xff]
        %v387 = vld [vmem:[%s238 + $0x198] sm:$0xff]
        %v388 = vld [vmem:[%s238 + $0x1a0] sm:$0xff]
        %v389 = vld [vmem:[%s238 + $0x1a8] sm:$0xff]
        %v390 = vld [vmem:[%s238 + $0x1b0] sm:$0xff]
        %v391 = vld [vmem:[%s238 + $0x1b8] sm:$0xff]
        %v392 = vld [vmem:[%s238 + $0x1c0] sm:$0xff]
        %v393 = vld [vmem:[%s238 + $0x1c8] sm:$0xff]
        %v394 = vld [vmem:[%s238 + $0x1d0] sm:$0xff]
        %v395 = vld [vmem:[%s238 + $0x1d8] sm:$0xff]
        %v396 = vld [vmem:[%s238 + $0x1e0] sm:$0xff]
        %v397 = vld [vmem:[%s238 + $0x1e8] sm:$0xff]
        %v398 = vld [vmem:[%s238 + $0x1f0] sm:$0xff]
        %v399 = vld [vmem:[%s238 + $0x1f8] sm:$0xff]
        %v416 = vunpack.c.l.b16 %v320
        %v417 = vunpack.c.h.b16 %v320
        %v418 = vunpack.c.l.b16 %v321
        %v419 = vunpack.c.h.b16 %v321
        %v420 = vunpack.c.l.b16 %v322
        %v421 = vunpack.c.h.b16 %v322
        %v422 = vunpack.c.l.b16 %v323
        %v423 = vunpack.c.h.b16 %v323
        %v424 = vunpack.c.l.b16 %v324
        %v425 = vunpack.c.h.b16 %v324
        %v426 = vunpack.c.l.b16 %v325
        %v427 = vunpack.c.h.b16 %v325
        %v428 = vunpack.c.l.b16 %v326
        %v429 = vunpack.c.h.b16 %v326
        %v430 = vunpack.c.l.b16 %v327
        %v431 = vunpack.c.h.b16 %v327
        %v432 = vunpack.c.l.b16 %v328
        %v433 = vunpack.c.h.b16 %v328
        %v434 = vunpack.c.l.b16 %v329
        %v435 = vunpack.c.h.b16 %v329
        %v436 = vunpack.c.l.b16 %v330
        %v437 = vunpack.c.h.b16 %v330
        %v438 = vunpack.c.l.b16 %v331
        %v439 = vunpack.c.h.b16 %v331
        %v440 = vunpack.c.l.b16 %v332
        %v441 = vunpack.c.h.b16 %v332
        %v442 = vunpack.c.l.b16 %v333
        %v443 = vunpack.c.h.b16 %v333
        %v444 = vunpack.c.l.b16 %v334
        %v445 = vunpack.c.h.b16 %v334
        %v446 = vunpack.c.l.b16 %v335
        %v447 = vunpack.c.h.b16 %v335
        %v448 = vpack.c.b16 %v418, %v416
        %v449 = vpack.c.b16 %v419, %v417
        %v450 = vpack.c.b16 %v422, %v420
        %v451 = vpack.c.b16 %v423, %v421
        %v452 = vpack.c.b16 %v426, %v424
        %v453 = vpack.c.b16 %v427, %v425
        %v454 = vpack.c.b16 %v430, %v428
        %v455 = vpack.c.b16 %v431, %v429
        %v456 = vpack.c.b16 %v434, %v432
        %v457 = vpack.c.b16 %v435, %v433
        %v458 = vpack.c.b16 %v438, %v436
        %v459 = vpack.c.b16 %v439, %v437
        %v460 = vpack.c.b16 %v442, %v440
        %v461 = vpack.c.b16 %v443, %v441
        %v462 = vpack.c.b16 %v446, %v444
        %v463 = vpack.c.b16 %v447, %v445
        %v544 = vunpack.c.l.b16 %v336
        %v545 = vunpack.c.h.b16 %v336
        %v546 = vunpack.c.l.b16 %v337
        %v547 = vunpack.c.h.b16 %v337
        %v548 = vunpack.c.l.b16 %v338
        %v549 = vunpack.c.h.b16 %v338
        %v550 = vunpack.c.l.b16 %v339
        %v551 = vunpack.c.h.b16 %v339
        %v552 = vunpack.c.l.b16 %v340
        %v553 = vunpack.c.h.b16 %v340
        %v554 = vunpack.c.l.b16 %v341
        %v555 = vunpack.c.h.b16 %v341
        %v556 = vunpack.c.l.b16 %v342
        %v557 = vunpack.c.h.b16 %v342
        %v558 = vunpack.c.l.b16 %v343
        %v559 = vunpack.c.h.b16 %v343
        %v560 = vunpack.c.l.b16 %v344
        %v561 = vunpack.c.h.b16 %v344
        %v562 = vunpack.c.l.b16 %v345
        %v563 = vunpack.c.h.b16 %v345
        %v564 = vunpack.c.l.b16 %v346
        %v565 = vunpack.c.h.b16 %v346
        %v566 = vunpack.c.l.b16 %v347
        %v567 = vunpack.c.h.b16 %v347
        %v568 = vunpack.c.l.b16 %v348
        %v569 = vunpack.c.h.b16 %v348
        %v570 = vunpack.c.l.b16 %v349
        %v571 = vunpack.c.h.b16 %v349
        %v572 = vunpack.c.l.b16 %v350
        %v573 = vunpack.c.h.b16 %v350
        %v574 = vunpack.c.l.b16 %v351
        %v575 = vunpack.c.h.b16 %v351
        %v576 = vunpack.c.l.b16 %v352
        %v577 = vunpack.c.h.b16 %v352
        %v578 = vunpack.c.l.b16 %v353
        %v579 = vunpack.c.h.b16 %v353
        %v580 = vunpack.c.l.b16 %v354
        %v581 = vunpack.c.h.b16 %v354
        %v582 = vunpack.c.l.b16 %v355
        %v583 = vunpack.c.h.b16 %v355
        %v584 = vunpack.c.l.b16 %v356
        %v585 = vunpack.c.h.b16 %v356
        %v586 = vunpack.c.l.b16 %v357
        %v587 = vunpack.c.h.b16 %v357
        %v588 = vunpack.c.l.b16 %v358
        %v589 = vunpack.c.h.b16 %v358
        %v590 = vunpack.c.l.b16 %v359
        %v591 = vunpack.c.h.b16 %v359
        %v592 = vunpack.c.l.b16 %v360
        %v593 = vunpack.c.h.b16 %v360
        %v594 = vunpack.c.l.b16 %v361
        %v595 = vunpack.c.h.b16 %v361
        %v596 = vunpack.c.l.b16 %v362
        %v597 = vunpack.c.h.b16 %v362
        %v598 = vunpack.c.l.b16 %v363
        %v599 = vunpack.c.h.b16 %v363
        %v600 = vunpack.c.l.b16 %v364
        %v601 = vunpack.c.h.b16 %v364
        %v602 = vunpack.c.l.b16 %v365
        %v603 = vunpack.c.h.b16 %v365
        %v604 = vunpack.c.l.b16 %v366
        %v605 = vunpack.c.h.b16 %v366
        %v606 = vunpack.c.l.b16 %v367
        %v607 = vunpack.c.h.b16 %v367
        %v608 = vunpack.c.l.b16 %v368
        %v609 = vunpack.c.h.b16 %v368
        %v610 = vunpack.c.l.b16 %v369
        %v611 = vunpack.c.h.b16 %v369
        %v612 = vunpack.c.l.b16 %v370
        %v613 = vunpack.c.h.b16 %v370
        %v614 = vunpack.c.l.b16 %v371
        %v615 = vunpack.c.h.b16 %v371
        %v616 = vunpack.c.l.b16 %v372
        %v617 = vunpack.c.h.b16 %v372
        %v618 = vunpack.c.l.b16 %v373
        %v619 = vunpack.c.h.b16 %v373
        %v620 = vunpack.c.l.b16 %v374
        %v621 = vunpack.c.h.b16 %v374
        %v622 = vunpack.c.l.b16 %v375
        %v623 = vunpack.c.h.b16 %v375
        %v624 = vunpack.c.l.b16 %v376
        %v625 = vunpack.c.h.b16 %v376
        %v626 = vunpack.c.l.b16 %v377
        %v627 = vunpack.c.h.b16 %v377
        %v628 = vunpack.c.l.b16 %v378
        %v629 = vunpack.c.h.b16 %v378
        %v630 = vunpack.c.l.b16 %v379
        %v631 = vunpack.c.h.b16 %v379
        %v632 = vunpack.c.l.b16 %v380
        %v633 = vunpack.c.h.b16 %v380
        %v634 = vunpack.c.l.b16 %v381
        %v635 = vunpack.c.h.b16 %v381
        %v636 = vunpack.c.l.b16 %v382
        %v637 = vunpack.c.h.b16 %v382
        %v638 = vunpack.c.l.b16 %v383
        %v639 = vunpack.c.h.b16 %v383
        %v640 = vunpack.c.l.b16 %v384
        %v641 = vunpack.c.h.b16 %v384
        %v642 = vunpack.c.l.b16 %v385
        %v643 = vunpack.c.h.b16 %v385
        %v644 = vunpack.c.l.b16 %v386
        %v645 = vunpack.c.h.b16 %v386
        %v646 = vunpack.c.l.b16 %v387
        %v647 = vunpack.c.h.b16 %v387
        %v648 = vunpack.c.l.b16 %v388
        %v649 = vunpack.c.h.b16 %v388
        %v650 = vunpack.c.l.b16 %v389
        %v651 = vunpack.c.h.b16 %v389
        %v652 = vunpack.c.l.b16 %v390
        %v653 = vunpack.c.h.b16 %v390
        %v654 = vunpack.c.l.b16 %v391
        %v655 = vunpack.c.h.b16 %v391
        %v656 = vunpack.c.l.b16 %v392
        %v657 = vunpack.c.h.b16 %v392
        %v658 = vunpack.c.l.b16 %v393
        %v659 = vunpack.c.h.b16 %v393
        %v660 = vunpack.c.l.b16 %v394
        %v661 = vunpack.c.h.b16 %v394
        %v662 = vunpack.c.l.b16 %v395
        %v663 = vunpack.c.h.b16 %v395
        %v664 = vunpack.c.l.b16 %v396
        %v665 = vunpack.c.h.b16 %v396
        %v666 = vunpack.c.l.b16 %v397
        %v667 = vunpack.c.h.b16 %v397
        %v668 = vunpack.c.l.b16 %v398
        %v669 = vunpack.c.h.b16 %v398
        %v670 = vunpack.c.l.b16 %v399
        %v671 = vunpack.c.h.b16 %v399
        %v672 = vpack.c.b16 %v548, %v544
        %v673 = vpack.c.b16 %v549, %v545
        %v674 = vpack.c.b16 %v550, %v546
        %v675 = vpack.c.b16 %v551, %v547
        %v676 = vpack.c.b16 %v556, %v552
        %v677 = vpack.c.b16 %v557, %v553
        %v678 = vpack.c.b16 %v558, %v554
        %v679 = vpack.c.b16 %v559, %v555
        %v680 = vpack.c.b16 %v564, %v560
        %v681 = vpack.c.b16 %v565, %v561
        %v682 = vpack.c.b16 %v566, %v562
        %v683 = vpack.c.b16 %v567, %v563
        %v684 = vpack.c.b16 %v572, %v568
        %v685 = vpack.c.b16 %v573, %v569
        %v686 = vpack.c.b16 %v574, %v570
        %v687 = vpack.c.b16 %v575, %v571
        %v688 = vpack.c.b16 %v580, %v576
        %v689 = vpack.c.b16 %v581, %v577
        %v690 = vpack.c.b16 %v582, %v578
        %v691 = vpack.c.b16 %v583, %v579
        %v692 = vpack.c.b16 %v588, %v584
        %v693 = vpack.c.b16 %v589, %v585
        %v694 = vpack.c.b16 %v590, %v586
        %v695 = vpack.c.b16 %v591, %v587
        %v696 = vpack.c.b16 %v596, %v592
        %v697 = vpack.c.b16 %v597, %v593
        %v698 = vpack.c.b16 %v598, %v594
        %v699 = vpack.c.b16 %v599, %v595
        %v700 = vpack.c.b16 %v604, %v600
        %v701 = vpack.c.b16 %v605, %v601
        %v702 = vpack.c.b16 %v606, %v602
        %v703 = vpack.c.b16 %v607, %v603
        %v704 = vpack.c.b16 %v612, %v608
        %v705 = vpack.c.b16 %v613, %v609
        %v706 = vpack.c.b16 %v614, %v610
        %v707 = vpack.c.b16 %v615, %v611
        %v708 = vpack.c.b16 %v620, %v616
        %v709 = vpack.c.b16 %v621, %v617
        %v710 = vpack.c.b16 %v622, %v618
        %v711 = vpack.c.b16 %v623, %v619
        %v712 = vpack.c.b16 %v628, %v624
        %v713 = vpack.c.b16 %v629, %v625
        %v714 = vpack.c.b16 %v630, %v626
        %v715 = vpack.c.b16 %v631, %v627
        %v716 = vpack.c.b16 %v636, %v632
        %v717 = vpack.c.b16 %v637, %v633
        %v718 = vpack.c.b16 %v638, %v634
        %v719 = vpack.c.b16 %v639, %v635
        %v720 = vpack.c.b16 %v644, %v640
        %v721 = vpack.c.b16 %v645, %v641
        %v722 = vpack.c.b16 %v646, %v642
        %v723 = vpack.c.b16 %v647, %v643
        %v724 = vpack.c.b16 %v652, %v648
        %v725 = vpack.c.b16 %v653, %v649
        %v726 = vpack.c.b16 %v654, %v650
        %v727 = vpack.c.b16 %v655, %v651
        %v728 = vpack.c.b16 %v660, %v656
        %v729 = vpack.c.b16 %v661, %v657
        %v730 = vpack.c.b16 %v662, %v658
        %v731 = vpack.c.b16 %v663, %v659
        %v732 = vpack.c.b16 %v668, %v664
        %v733 = vpack.c.b16 %v669, %v665
        %v734 = vpack.c.b16 %v670, %v666
        %v735 = vpack.c.b16 %v671, %v667
        %800 = vmatprep.subr.bf16.mxu0 %v701
        %801 = vmatpush1.bf16.msra.mxu0 %v700
        %802 = vmatprep.subr.bf16.mxu0 %v697
        %803 = vmatpush1.bf16.msra.mxu0 %v696
        %804 = vmatprep.subr.bf16.mxu0 %v693
        %805 = vmatpush1.bf16.msra.mxu0 %v692
        %806 = vmatprep.subr.bf16.mxu0 %v689
        %807 = vmatpush1.bf16.msra.mxu0 %v688
        %808 = vmatprep.subr.bf16.mxu0 %v685
        %809 = vmatpush1.bf16.msra.mxu0 %v684
        %810 = vmatprep.subr.bf16.mxu0 %v681
        %811 = vmatpush1.bf16.msra.mxu0 %v680
        %812 = vmatprep.subr.bf16.mxu0 %v677
        %813 = vmatpush1.bf16.msra.mxu0 %v676
        %814 = vmatprep.subr.bf16.mxu0 %v673
        %815 = vmatpush1.bf16.msra.mxu0 %v672
        %816 = vmatprep.subr.bf16.mxu0 %v733
        %817 = vmatpush2.bf16.msra.mxu0 %v732
        %818 = vmatprep.subr.bf16.mxu0 %v729
        %819 = vmatpush2.bf16.msra.mxu0 %v728
        %820 = vmatprep.subr.bf16.mxu0 %v725
        %821 = vmatpush2.bf16.msra.mxu0 %v724
        %822 = vmatprep.subr.bf16.mxu0 %v721
        %823 = vmatpush2.bf16.msra.mxu0 %v720
        %824 = vmatprep.subr.bf16.mxu0 %v717
        %825 = vmatpush2.bf16.msra.mxu0 %v716
        %826 = vmatprep.subr.bf16.mxu0 %v713
        %827 = vmatpush2.bf16.msra.mxu0 %v712
        %828 = vmatprep.subr.bf16.mxu0 %v709
        %829 = vmatpush2.bf16.msra.mxu0 %v708
        %830 = vmatprep.subr.bf16.mxu0 %v705
        %831 = vmatpush2.bf16.msra.mxu0 %v704
        %832 = vmatprep.mubr.bf16.mxu0 %v449
        %833 = vmatmul.mubr.bf16.gmra.mxu0 %v448
        %v834 = vpop.f32.mrf.mxu0
        %v835 = vadd.f32 0.0, %v834
        %v836 = vpop.f32.mrf.mxu0
        %v837 = vadd.f32 0.0, %v836
        %v838 = vpop.f32.mrf.mxu0
        %v839 = vadd.f32 0.0, %v838
        %v840 = vpop.f32.mrf.mxu0
        %v841 = vadd.f32 0.0, %v840
        %842 = vmatprep.mubr.bf16.mxu0 %v451
        %843 = vmatmul.mubr.bf16.gmra.mxu0 %v450
        %v844 = vpop.f32.mrf.mxu0
        %v845 = vadd.f32 0.0, %v844
        %v846 = vpop.f32.mrf.mxu0
        %v847 = vadd.f32 0.0, %v846
        %v848 = vpop.f32.mrf.mxu0
        %v849 = vadd.f32 0.0, %v848
        %v850 = vpop.f32.mrf.mxu0
        %v851 = vadd.f32 0.0, %v850
        %852 = vmatprep.mubr.bf16.mxu0 %v453
        %853 = vmatmul.mubr.bf16.gmra.mxu0 %v452
        %v854 = vpop.f32.mrf.mxu0
        %v855 = vadd.f32 0.0, %v854
        %v856 = vpop.f32.mrf.mxu0
        %v857 = vadd.f32 0.0, %v856
        %v858 = vpop.f32.mrf.mxu0
        %v859 = vadd.f32 0.0, %v858
        %v860 = vpop.f32.mrf.mxu0
        %v861 = vadd.f32 0.0, %v860
        %862 = vmatprep.mubr.bf16.mxu0 %v455
        %863 = vmatmul.mubr.bf16.gmra.mxu0 %v454
        %v864 = vpop.f32.mrf.mxu0
        %v865 = vadd.f32 0.0, %v864
        %v866 = vpop.f32.mrf.mxu0
        %v867 = vadd.f32 0.0, %v866
        %v868 = vpop.f32.mrf.mxu0
        %v869 = vadd.f32 0.0, %v868
        %v870 = vpop.f32.mrf.mxu0
        %v871 = vadd.f32 0.0, %v870
        %872 = vmatprep.mubr.bf16.mxu0 %v457
        %873 = vmatmul.mubr.bf16.gmra.mxu0 %v456
        %v874 = vpop.f32.mrf.mxu0
        %v875 = vadd.f32 0.0, %v874
        %v876 = vpop.f32.mrf.mxu0
        %v877 = vadd.f32 0.0, %v876
        %v878 = vpop.f32.mrf.mxu0
        %v879 = vadd.f32 0.0, %v878
        %v880 = vpop.f32.mrf.mxu0
        %v881 = vadd.f32 0.0, %v880
        %882 = vmatprep.mubr.bf16.mxu0 %v459
        %883 = vmatmul.mubr.bf16.gmra.mxu0 %v458
        %v884 = vpop.f32.mrf.mxu0
        %v885 = vadd.f32 0.0, %v884
        %v886 = vpop.f32.mrf.mxu0
        %v887 = vadd.f32 0.0, %v886
        %v888 = vpop.f32.mrf.mxu0
        %v889 = vadd.f32 0.0, %v888
        %v890 = vpop.f32.mrf.mxu0
        %v891 = vadd.f32 0.0, %v890
        %892 = vmatprep.mubr.bf16.mxu0 %v461
        %893 = vmatmul.mubr.bf16.gmra.mxu0 %v460
        %v894 = vpop.f32.mrf.mxu0
        %v895 = vadd.f32 0.0, %v894
        %v896 = vpop.f32.mrf.mxu0
        %v897 = vadd.f32 0.0, %v896
        %v898 = vpop.f32.mrf.mxu0
        %v899 = vadd.f32 0.0, %v898
        %v900 = vpop.f32.mrf.mxu0
        %v901 = vadd.f32 0.0, %v900
        %902 = vmatprep.mubr.bf16.mxu0 %v463
        %903 = vmatmul.mubr.bf16.gmra.mxu0 %v462
        %v904 = vpop.f32.mrf.mxu0
        %v905 = vadd.f32 0.0, %v904
        %v906 = vpop.f32.mrf.mxu0
        %v907 = vadd.f32 0.0, %v906
        %v908 = vpop.f32.mrf.mxu0
        %v909 = vadd.f32 0.0, %v908
        %v910 = vpop.f32.mrf.mxu0
        %v911 = vadd.f32 0.0, %v910
        %912 = vdwg.mxu0
        %913 = vmatprep.subr.bf16.mxu0 %v703
        %914 = vmatpush1.bf16.msra.mxu0 %v702
        %915 = vmatprep.subr.bf16.mxu0 %v699
        %916 = vmatpush1.bf16.msra.mxu0 %v698
        %917 = vmatprep.subr.bf16.mxu0 %v695
        %918 = vmatpush1.bf16.msra.mxu0 %v694
        %919 = vmatprep.subr.bf16.mxu0 %v691
        %920 = vmatpush1.bf16.msra.mxu0 %v690
        %921 = vmatprep.subr.bf16.mxu0 %v687
        %922 = vmatpush1.bf16.msra.mxu0 %v686
        %923 = vmatprep.subr.bf16.mxu0 %v683
        %924 = vmatpush1.bf16.msra.mxu0 %v682
        %925 = vmatprep.subr.bf16.mxu0 %v679
        %926 = vmatpush1.bf16.msra.mxu0 %v678
        %927 = vmatprep.subr.bf16.mxu0 %v675
        %928 = vmatpush1.bf16.msra.mxu0 %v674
        %929 = vmatprep.subr.bf16.mxu0 %v735
        %930 = vmatpush2.bf16.msra.mxu0 %v734
        %931 = vmatprep.subr.bf16.mxu0 %v731
        %932 = vmatpush2.bf16.msra.mxu0 %v730
        %933 = vmatprep.subr.bf16.mxu0 %v727
        %934 = vmatpush2.bf16.msra.mxu0 %v726
        %935 = vmatprep.subr.bf16.mxu0 %v723
        %936 = vmatpush2.bf16.msra.mxu0 %v722
        %937 = vmatprep.subr.bf16.mxu0 %v719
        %938 = vmatpush2.bf16.msra.mxu0 %v718
        %939 = vmatprep.subr.bf16.mxu0 %v715
        %940 = vmatpush2.bf16.msra.mxu0 %v714
        %941 = vmatprep.subr.bf16.mxu0 %v711
        %942 = vmatpush2.bf16.msra.mxu0 %v710
        %943 = vmatprep.subr.bf16.mxu0 %v707
        %944 = vmatpush2.bf16.msra.mxu0 %v706
        %945 = vmatprep.mubr.bf16.mxu0 %v449
        %946 = vmatmul.mubr.bf16.gmra.mxu0 %v448
        %v947 = vpop.f32.mrf.mxu0
        %v948 = vadd.f32 0.0, %v947
        %v949 = vpop.f32.mrf.mxu0
        %v950 = vadd.f32 0.0, %v949
        %v951 = vpop.f32.mrf.mxu0
        %v952 = vadd.f32 0.0, %v951
        %v953 = vpop.f32.mrf.mxu0
        %v954 = vadd.f32 0.0, %v953
        %955 = vmatprep.mubr.bf16.mxu0 %v451
        %956 = vmatmul.mubr.bf16.gmra.mxu0 %v450
        %v957 = vpop.f32.mrf.mxu0
        %v958 = vadd.f32 0.0, %v957
        %v959 = vpop.f32.mrf.mxu0
        %v960 = vadd.f32 0.0, %v959
        %v961 = vpop.f32.mrf.mxu0
        %v962 = vadd.f32 0.0, %v961
        %v963 = vpop.f32.mrf.mxu0
        %v964 = vadd.f32 0.0, %v963
        %965 = vmatprep.mubr.bf16.mxu0 %v453
        %966 = vmatmul.mubr.bf16.gmra.mxu0 %v452
        %v967 = vpop.f32.mrf.mxu0
        %v968 = vadd.f32 0.0, %v967
        %v969 = vpop.f32.mrf.mxu0
        %v970 = vadd.f32 0.0, %v969
        %v971 = vpop.f32.mrf.mxu0
        %v972 = vadd.f32 0.0, %v971
        %v973 = vpop.f32.mrf.mxu0
        %v974 = vadd.f32 0.0, %v973
        %975 = vmatprep.mubr.bf16.mxu0 %v455
        %976 = vmatmul.mubr.bf16.gmra.mxu0 %v454
        %v977 = vpop.f32.mrf.mxu0
        %v978 = vadd.f32 0.0, %v977
        %v979 = vpop.f32.mrf.mxu0
        %v980 = vadd.f32 0.0, %v979
        %v981 = vpop.f32.mrf.mxu0
        %v982 = vadd.f32 0.0, %v981
        %v983 = vpop.f32.mrf.mxu0
        %v984 = vadd.f32 0.0, %v983
        %985 = vmatprep.mubr.bf16.mxu0 %v457
        %986 = vmatmul.mubr.bf16.gmra.mxu0 %v456
        %v987 = vpop.f32.mrf.mxu0
        %v988 = vadd.f32 0.0, %v987
        %v989 = vpop.f32.mrf.mxu0
        %v990 = vadd.f32 0.0, %v989
        %v991 = vpop.f32.mrf.mxu0
        %v992 = vadd.f32 0.0, %v991
        %v993 = vpop.f32.mrf.mxu0
        %v994 = vadd.f32 0.0, %v993
        %995 = vmatprep.mubr.bf16.mxu0 %v459
        %996 = vmatmul.mubr.bf16.gmra.mxu0 %v458
        %v997 = vpop.f32.mrf.mxu0
        %v998 = vadd.f32 0.0, %v997
        %v999 = vpop.f32.mrf.mxu0
        %v1000 = vadd.f32 0.0, %v999
        %v1001 = vpop.f32.mrf.mxu0
        %v1002 = vadd.f32 0.0, %v1001
        %v1003 = vpop.f32.mrf.mxu0
        %v1004 = vadd.f32 0.0, %v1003
        %1005 = vmatprep.mubr.bf16.mxu0 %v461
        %1006 = vmatmul.mubr.bf16.gmra.mxu0 %v460
        %v1007 = vpop.f32.mrf.mxu0
        %v1008 = vadd.f32 0.0, %v1007
        %v1009 = vpop.f32.mrf.mxu0
        %v1010 = vadd.f32 0.0, %v1009
        %v1011 = vpop.f32.mrf.mxu0
        %v1012 = vadd.f32 0.0, %v1011
        %v1013 = vpop.f32.mrf.mxu0
        %v1014 = vadd.f32 0.0, %v1013
        %1015 = vmatprep.mubr.bf16.mxu0 %v463
        %1016 = vmatmul.mubr.bf16.gmra.mxu0 %v462
        %v1017 = vpop.f32.mrf.mxu0
        %v1018 = vadd.f32 0.0, %v1017
        %v1019 = vpop.f32.mrf.mxu0
        %v1020 = vadd.f32 0.0, %v1019
        %v1021 = vpop.f32.mrf.mxu0
        %v1022 = vadd.f32 0.0, %v1021
        %v1023 = vpop.f32.mrf.mxu0
        %v1024 = vadd.f32 0.0, %v1023
        %1025 = vdwg.mxu0
        %v1026 = vxor.u32 %v835, 2147483648
        %v1027 = vxor.u32 %v837, 2147483648
        %v1028 = vxor.u32 %v839, 2147483648
        %v1029 = vxor.u32 %v841, 2147483648
        %v1030 = vxor.u32 %v845, 2147483648
        %v1031 = vxor.u32 %v847, 2147483648
        %v1032 = vxor.u32 %v849, 2147483648
        %v1033 = vxor.u32 %v851, 2147483648
        %v1034 = vxor.u32 %v855, 2147483648
        %v1035 = vxor.u32 %v857, 2147483648
        %v1036 = vxor.u32 %v859, 2147483648
        %v1037 = vxor.u32 %v861, 2147483648
        %v1038 = vxor.u32 %v865, 2147483648
        %v1039 = vxor.u32 %v867, 2147483648
        %v1040 = vxor.u32 %v869, 2147483648
        %v1041 = vxor.u32 %v871, 2147483648
        %v1042 = vxor.u32 %v875, 2147483648
        %v1043 = vxor.u32 %v877, 2147483648
        %v1044 = vxor.u32 %v879, 2147483648
        %v1045 = vxor.u32 %v881, 2147483648
        %v1046 = vxor.u32 %v885, 2147483648
        %v1047 = vxor.u32 %v887, 2147483648
        %v1048 = vxor.u32 %v889, 2147483648
        %v1049 = vxor.u32 %v891, 2147483648
        %v1050 = vxor.u32 %v895, 2147483648
        %v1051 = vxor.u32 %v897, 2147483648
        %v1052 = vxor.u32 %v899, 2147483648
        %v1053 = vxor.u32 %v901, 2147483648
        %v1054 = vxor.u32 %v905, 2147483648
        %v1055 = vxor.u32 %v907, 2147483648
        %v1056 = vxor.u32 %v909, 2147483648
        %v1057 = vxor.u32 %v911, 2147483648
        %v1058 = vmul.f32 %v1026, 1.442695
        %v1059 = vpow.pop %v1058
        %v1060 = vmul.f32 %v1027, 1.442695
        %v1061 = vpow.pop %v1060
        %v1062 = vmul.f32 %v1028, 1.442695
        %v1063 = vpow.pop %v1062
        %v1064 = vmul.f32 %v1029, 1.442695
        %v1065 = vpow.pop %v1064
        %v1066 = vmul.f32 %v1030, 1.442695
        %v1067 = vpow.pop %v1066
        %v1068 = vmul.f32 %v1031, 1.442695
        %v1069 = vpow.pop %v1068
        %v1070 = vmul.f32 %v1032, 1.442695
        %v1071 = vpow.pop %v1070
        %v1072 = vmul.f32 %v1033, 1.442695
        %v1073 = vpow.pop %v1072
        %v1074 = vmul.f32 %v1034, 1.442695
        %v1075 = vpow.pop %v1074
        %v1076 = vmul.f32 %v1035, 1.442695
        %v1077 = vpow.pop %v1076
        %v1078 = vmul.f32 %v1036, 1.442695
        %v1079 = vpow.pop %v1078
        %v1080 = vmul.f32 %v1037, 1.442695
        %v1081 = vpow.pop %v1080
        %v1082 = vmul.f32 %v1038, 1.442695
        %v1083 = vpow.pop %v1082
        %v1084 = vmul.f32 %v1039, 1.442695
        %v1085 = vpow.pop %v1084
        %v1086 = vmul.f32 %v1040, 1.442695
        %v1087 = vpow.pop %v1086
        %v1088 = vmul.f32 %v1041, 1.442695
        %v1089 = vpow.pop %v1088
        %v1090 = vmul.f32 %v1042, 1.442695
        %v1091 = vpow.pop %v1090
        %v1092 = vmul.f32 %v1043, 1.442695
        %v1093 = vpow.pop %v1092
        %v1094 = vmul.f32 %v1044, 1.442695
        %v1095 = vpow.pop %v1094
        %v1096 = vmul.f32 %v1045, 1.442695
        %v1097 = vpow.pop %v1096
        %v1098 = vmul.f32 %v1046, 1.442695
        %v1099 = vpow.pop %v1098
        %v1100 = vmul.f32 %v1047, 1.442695
        %v1101 = vpow.pop %v1100
        %v1102 = vmul.f32 %v1048, 1.442695
        %v1103 = vpow.pop %v1102
        %v1104 = vmul.f32 %v1049, 1.442695
        %v1105 = vpow.pop %v1104
        %v1106 = vmul.f32 %v1050, 1.442695
        %v1107 = vpow.pop %v1106
        %v1108 = vmul.f32 %v1051, 1.442695
        %v1109 = vpow.pop %v1108
        %v1110 = vmul.f32 %v1052, 1.442695
        %v1111 = vpow.pop %v1110
        %v1112 = vmul.f32 %v1053, 1.442695
        %v1113 = vpow.pop %v1112
        %v1114 = vmul.f32 %v1054, 1.442695
        %v1115 = vpow.pop %v1114
        %v1116 = vmul.f32 %v1055, 1.442695
        %v1117 = vpow.pop %v1116
        %v1118 = vmul.f32 %v1056, 1.442695
        %v1119 = vpow.pop %v1118
        %v1120 = vmul.f32 %v1057, 1.442695
        %v1121 = vpow.pop %v1120
        %v1122 = vadd.f32 %v1059, 1.0
        %v1123 = vadd.f32 %v1061, 1.0
        %v1124 = vadd.f32 %v1063, 1.0
        %v1125 = vadd.f32 %v1065, 1.0
        %v1126 = vadd.f32 %v1067, 1.0
        %v1127 = vadd.f32 %v1069, 1.0
        %v1128 = vadd.f32 %v1071, 1.0
        %v1129 = vadd.f32 %v1073, 1.0
        %v1130 = vadd.f32 %v1075, 1.0
        %v1131 = vadd.f32 %v1077, 1.0
        %v1132 = vadd.f32 %v1079, 1.0
        %v1133 = vadd.f32 %v1081, 1.0
        %v1134 = vadd.f32 %v1083, 1.0
        %v1135 = vadd.f32 %v1085, 1.0
        %v1136 = vadd.f32 %v1087, 1.0
        %v1137 = vadd.f32 %v1089, 1.0
        %v1138 = vadd.f32 %v1091, 1.0
        %v1139 = vadd.f32 %v1093, 1.0
        %v1140 = vadd.f32 %v1095, 1.0
        %v1141 = vadd.f32 %v1097, 1.0
        %v1142 = vadd.f32 %v1099, 1.0
        %v1143 = vadd.f32 %v1101, 1.0
        %v1144 = vadd.f32 %v1103, 1.0
        %v1145 = vadd.f32 %v1105, 1.0
        %v1146 = vadd.f32 %v1107, 1.0
        %v1147 = vadd.f32 %v1109, 1.0
        %v1148 = vadd.f32 %v1111, 1.0
        %v1149 = vadd.f32 %v1113, 1.0
        %v1150 = vadd.f32 %v1115, 1.0
        %v1151 = vadd.f32 %v1117, 1.0
        %v1152 = vadd.f32 %v1119, 1.0
        %v1153 = vadd.f32 %v1121, 1.0
        %v1154 = vrcp.pop %v1122
        %v1155 = vmul.f32 1.0, %v1154
        %v1156 = vrcp.pop %v1123
        %v1157 = vmul.f32 1.0, %v1156
        %v1158 = vrcp.pop %v1124
        %v1159 = vmul.f32 1.0, %v1158
        %v1160 = vrcp.pop %v1125
        %v1161 = vmul.f32 1.0, %v1160
        %v1162 = vrcp.pop %v1126
        %v1163 = vmul.f32 1.0, %v1162
        %v1164 = vrcp.pop %v1127
        %v1165 = vmul.f32 1.0, %v1164
        %v1166 = vrcp.pop %v1128
        %v1167 = vmul.f32 1.0, %v1166
        %v1168 = vrcp.pop %v1129
        %v1169 = vmul.f32 1.0, %v1168
        %v1170 = vrcp.pop %v1130
        %v1171 = vmul.f32 1.0, %v1170
        %v1172 = vrcp.pop %v1131
        %v1173 = vmul.f32 1.0, %v1172
        %v1174 = vrcp.pop %v1132
        %v1175 = vmul.f32 1.0, %v1174
        %v1176 = vrcp.pop %v1133
        %v1177 = vmul.f32 1.0, %v1176
        %v1178 = vrcp.pop %v1134
        %v1179 = vmul.f32 1.0, %v1178
        %v1180 = vrcp.pop %v1135
        %v1181 = vmul.f32 1.0, %v1180
        %v1182 = vrcp.pop %v1136
        %v1183 = vmul.f32 1.0, %v1182
        %v1184 = vrcp.pop %v1137
        %v1185 = vmul.f32 1.0, %v1184
        %v1186 = vrcp.pop %v1138
        %v1187 = vmul.f32 1.0, %v1186
        %v1188 = vrcp.pop %v1139
        %v1189 = vmul.f32 1.0, %v1188
        %v1190 = vrcp.pop %v1140
        %v1191 = vmul.f32 1.0, %v1190
        %v1192 = vrcp.pop %v1141
        %v1193 = vmul.f32 1.0, %v1192
        %v1194 = vrcp.pop %v1142
        %v1195 = vmul.f32 1.0, %v1194
        %v1196 = vrcp.pop %v1143
        %v1197 = vmul.f32 1.0, %v1196
        %v1198 = vrcp.pop %v1144
        %v1199 = vmul.f32 1.0, %v1198
        %v1200 = vrcp.pop %v1145
        %v1201 = vmul.f32 1.0, %v1200
        %v1202 = vrcp.pop %v1146
        %v1203 = vmul.f32 1.0, %v1202
        %v1204 = vrcp.pop %v1147
        %v1205 = vmul.f32 1.0, %v1204
        %v1206 = vrcp.pop %v1148
        %v1207 = vmul.f32 1.0, %v1206
        %v1208 = vrcp.pop %v1149
        %v1209 = vmul.f32 1.0, %v1208
        %v1210 = vrcp.pop %v1150
        %v1211 = vmul.f32 1.0, %v1210
        %v1212 = vrcp.pop %v1151
        %v1213 = vmul.f32 1.0, %v1212
        %v1214 = vrcp.pop %v1152
        %v1215 = vmul.f32 1.0, %v1214
        %v1216 = vrcp.pop %v1153
        %v1217 = vmul.f32 1.0, %v1216
        %v1218 = vmul.f32 %v835, %v1155
        %v1219 = vmul.f32 %v837, %v1157
        %v1220 = vmul.f32 %v839, %v1159
        %v1221 = vmul.f32 %v841, %v1161
        %v1222 = vmul.f32 %v845, %v1163
        %v1223 = vmul.f32 %v847, %v1165
        %v1224 = vmul.f32 %v849, %v1167
        %v1225 = vmul.f32 %v851, %v1169
        %v1226 = vmul.f32 %v855, %v1171
        %v1227 = vmul.f32 %v857, %v1173
        %v1228 = vmul.f32 %v859, %v1175
        %v1229 = vmul.f32 %v861, %v1177
        %v1230 = vmul.f32 %v865, %v1179
        %v1231 = vmul.f32 %v867, %v1181
        %v1232 = vmul.f32 %v869, %v1183
        %v1233 = vmul.f32 %v871, %v1185
        %v1234 = vmul.f32 %v875, %v1187
        %v1235 = vmul.f32 %v877, %v1189
        %v1236 = vmul.f32 %v879, %v1191
        %v1237 = vmul.f32 %v881, %v1193
        %v1238 = vmul.f32 %v885, %v1195
        %v1239 = vmul.f32 %v887, %v1197
        %v1240 = vmul.f32 %v889, %v1199
        %v1241 = vmul.f32 %v891, %v1201
        %v1242 = vmul.f32 %v895, %v1203
        %v1243 = vmul.f32 %v897, %v1205
        %v1244 = vmul.f32 %v899, %v1207
        %v1245 = vmul.f32 %v901, %v1209
        %v1246 = vmul.f32 %v905, %v1211
        %v1247 = vmul.f32 %v907, %v1213
        %v1248 = vmul.f32 %v909, %v1215
        %v1249 = vmul.f32 %v911, %v1217
        %v1250 = vmul.f32 %v1218, %v948
        %v1251 = vmul.f32 %v1219, %v950
        %v1252 = vmul.f32 %v1220, %v952
        %v1253 = vmul.f32 %v1221, %v954
        %v1254 = vmul.f32 %v1222, %v958
        %v1255 = vmul.f32 %v1223, %v960
        %v1256 = vmul.f32 %v1224, %v962
        %v1257 = vmul.f32 %v1225, %v964
        %v1258 = vmul.f32 %v1226, %v968
        %v1259 = vmul.f32 %v1227, %v970
        %v1260 = vmul.f32 %v1228, %v972
        %v1261 = vmul.f32 %v1229, %v974
        %v1262 = vmul.f32 %v1230, %v978
        %v1263 = vmul.f32 %v1231, %v980
        %v1264 = vmul.f32 %v1232, %v982
        %v1265 = vmul.f32 %v1233, %v984
        %v1266 = vmul.f32 %v1234, %v988
        %v1267 = vmul.f32 %v1235, %v990
        %v1268 = vmul.f32 %v1236, %v992
        %v1269 = vmul.f32 %v1237, %v994
        %v1270 = vmul.f32 %v1238, %v998
        %v1271 = vmul.f32 %v1239, %v1000
        %v1272 = vmul.f32 %v1240, %v1002
        %v1273 = vmul.f32 %v1241, %v1004
        %v1274 = vmul.f32 %v1242, %v1008
        %v1275 = vmul.f32 %v1243, %v1010
        %v1276 = vmul.f32 %v1244, %v1012
        %v1277 = vmul.f32 %v1245, %v1014
        %v1278 = vmul.f32 %v1246, %v1018
        %v1279 = vmul.f32 %v1247, %v1020
        %v1280 = vmul.f32 %v1248, %v1022
        %v1281 = vmul.f32 %v1249, %v1024
        %v1282 = vld [vmem:[#allocation2] sm:$0xff]
        %v1283 = vld [vmem:[#allocation2 + $0x8] sm:$0xff]
        %v1284 = vld [vmem:[#allocation2 + $0x10] sm:$0xff]
        %v1285 = vld [vmem:[#allocation2 + $0x18] sm:$0xff]
        %v1286 = vld [vmem:[#allocation2 + $0x20] sm:$0xff]
        %v1287 = vld [vmem:[#allocation2 + $0x28] sm:$0xff]
        %v1288 = vld [vmem:[#allocation2 + $0x30] sm:$0xff]
        %v1289 = vld [vmem:[#allocation2 + $0x38] sm:$0xff]
        %v1290 = vld [vmem:[#allocation2 + $0x40] sm:$0xff]
        %v1291 = vld [vmem:[#allocation2 + $0x48] sm:$0xff]
        %v1292 = vld [vmem:[#allocation2 + $0x50] sm:$0xff]
        %v1293 = vld [vmem:[#allocation2 + $0x58] sm:$0xff]
        %v1294 = vld [vmem:[#allocation2 + $0x60] sm:$0xff]
        %v1295 = vld [vmem:[#allocation2 + $0x68] sm:$0xff]
        %v1296 = vld [vmem:[#allocation2 + $0x70] sm:$0xff]
        %v1297 = vld [vmem:[#allocation2 + $0x78] sm:$0xff]
        %v1298 = vld [vmem:[#allocation2 + $0x80] sm:$0xff]
        %v1299 = vld [vmem:[#allocation2 + $0x88] sm:$0xff]
        %v1300 = vld [vmem:[#allocation2 + $0x90] sm:$0xff]
        %v1301 = vld [vmem:[#allocation2 + $0x98] sm:$0xff]
        %v1302 = vld [vmem:[#allocation2 + $0xa0] sm:$0xff]
        %v1303 = vld [vmem:[#allocation2 + $0xa8] sm:$0xff]
        %v1304 = vld [vmem:[#allocation2 + $0xb0] sm:$0xff]
        %v1305 = vld [vmem:[#allocation2 + $0xb8] sm:$0xff]
        %v1306 = vld [vmem:[#allocation2 + $0xc0] sm:$0xff]
        %v1307 = vld [vmem:[#allocation2 + $0xc8] sm:$0xff]
        %v1308 = vld [vmem:[#allocation2 + $0xd0] sm:$0xff]
        %v1309 = vld [vmem:[#allocation2 + $0xd8] sm:$0xff]
        %v1310 = vld [vmem:[#allocation2 + $0xe0] sm:$0xff]
        %v1311 = vld [vmem:[#allocation2 + $0xe8] sm:$0xff]
        %v1312 = vld [vmem:[#allocation2 + $0xf0] sm:$0xff]
        %v1313 = vld [vmem:[#allocation2 + $0xf8] sm:$0xff]
        %v1314 = vpack.c.bf16 %v1252, %v1250
        %v1315 = vpack.c.bf16 %v1253, %v1251
        %v1316 = vpack.c.bf16 %v1256, %v1254
        %v1317 = vpack.c.bf16 %v1257, %v1255
        %v1318 = vpack.c.bf16 %v1260, %v1258
        %v1319 = vpack.c.bf16 %v1261, %v1259
        %v1320 = vpack.c.bf16 %v1264, %v1262
        %v1321 = vpack.c.bf16 %v1265, %v1263
        %v1322 = vpack.c.bf16 %v1268, %v1266
        %v1323 = vpack.c.bf16 %v1269, %v1267
        %v1324 = vpack.c.bf16 %v1272, %v1270
        %v1325 = vpack.c.bf16 %v1273, %v1271
        %v1326 = vpack.c.bf16 %v1276, %v1274
        %v1327 = vpack.c.bf16 %v1277, %v1275
        %v1328 = vpack.c.bf16 %v1280, %v1278
        %v1329 = vpack.c.bf16 %v1281, %v1279
        %v1330 = vld [vmem:[%s247] sm:$0xff]
        %v1331 = vld [vmem:[%s247 + $0x8] sm:$0xff]
        %v1332 = vld [vmem:[%s247 + $0x10] sm:$0xff]
        %v1333 = vld [vmem:[%s247 + $0x18] sm:$0xff]
        %v1334 = vld [vmem:[%s247 + $0x20] sm:$0xff]
        %v1335 = vld [vmem:[%s247 + $0x28] sm:$0xff]
        %v1336 = vld [vmem:[%s247 + $0x30] sm:$0xff]
        %v1337 = vld [vmem:[%s247 + $0x38] sm:$0xff]
        %v1338 = vld [vmem:[%s247 + $0x40] sm:$0xff]
        %v1339 = vld [vmem:[%s247 + $0x48] sm:$0xff]
        %v1340 = vld [vmem:[%s247 + $0x50] sm:$0xff]
        %v1341 = vld [vmem:[%s247 + $0x58] sm:$0xff]
        %v1342 = vld [vmem:[%s247 + $0x60] sm:$0xff]
        %v1343 = vld [vmem:[%s247 + $0x68] sm:$0xff]
        %v1344 = vld [vmem:[%s247 + $0x70] sm:$0xff]
        %v1345 = vld [vmem:[%s247 + $0x78] sm:$0xff]
        %v1346 = vld [vmem:[%s247 + $0x80] sm:$0xff]
        %v1347 = vld [vmem:[%s247 + $0x88] sm:$0xff]
        %v1348 = vld [vmem:[%s247 + $0x90] sm:$0xff]
        %v1349 = vld [vmem:[%s247 + $0x98] sm:$0xff]
        %v1350 = vld [vmem:[%s247 + $0xa0] sm:$0xff]
        %v1351 = vld [vmem:[%s247 + $0xa8] sm:$0xff]
        %v1352 = vld [vmem:[%s247 + $0xb0] sm:$0xff]
        %v1353 = vld [vmem:[%s247 + $0xb8] sm:$0xff]
        %v1354 = vld [vmem:[%s247 + $0xc0] sm:$0xff]
        %v1355 = vld [vmem:[%s247 + $0xc8] sm:$0xff]
        %v1356 = vld [vmem:[%s247 + $0xd0] sm:$0xff]
        %v1357 = vld [vmem:[%s247 + $0xd8] sm:$0xff]
        %v1358 = vld [vmem:[%s247 + $0xe0] sm:$0xff]
        %v1359 = vld [vmem:[%s247 + $0xe8] sm:$0xff]
        %v1360 = vld [vmem:[%s247 + $0xf0] sm:$0xff]
        %v1361 = vld [vmem:[%s247 + $0xf8] sm:$0xff]
        %v1394 = vunpack.c.l.b16 %v1330
        %v1395 = vunpack.c.h.b16 %v1330
        %v1396 = vunpack.c.l.b16 %v1331
        %v1397 = vunpack.c.h.b16 %v1331
        %v1398 = vunpack.c.l.b16 %v1332
        %v1399 = vunpack.c.h.b16 %v1332
        %v1400 = vunpack.c.l.b16 %v1333
        %v1401 = vunpack.c.h.b16 %v1333
        %v1402 = vunpack.c.l.b16 %v1334
        %v1403 = vunpack.c.h.b16 %v1334
        %v1404 = vunpack.c.l.b16 %v1335
        %v1405 = vunpack.c.h.b16 %v1335
        %v1406 = vunpack.c.l.b16 %v1336
        %v1407 = vunpack.c.h.b16 %v1336
        %v1408 = vunpack.c.l.b16 %v1337
        %v1409 = vunpack.c.h.b16 %v1337
        %v1410 = vunpack.c.l.b16 %v1338
        %v1411 = vunpack.c.h.b16 %v1338
        %v1412 = vunpack.c.l.b16 %v1339
        %v1413 = vunpack.c.h.b16 %v1339
        %v1414 = vunpack.c.l.b16 %v1340
        %v1415 = vunpack.c.h.b16 %v1340
        %v1416 = vunpack.c.l.b16 %v1341
        %v1417 = vunpack.c.h.b16 %v1341
        %v1418 = vunpack.c.l.b16 %v1342
        %v1419 = vunpack.c.h.b16 %v1342
        %v1420 = vunpack.c.l.b16 %v1343
        %v1421 = vunpack.c.h.b16 %v1343
        %v1422 = vunpack.c.l.b16 %v1344
        %v1423 = vunpack.c.h.b16 %v1344
        %v1424 = vunpack.c.l.b16 %v1345
        %v1425 = vunpack.c.h.b16 %v1345
        %v1426 = vunpack.c.l.b16 %v1346
        %v1427 = vunpack.c.h.b16 %v1346
        %v1428 = vunpack.c.l.b16 %v1347
        %v1429 = vunpack.c.h.b16 %v1347
        %v1430 = vunpack.c.l.b16 %v1348
        %v1431 = vunpack.c.h.b16 %v1348
        %v1432 = vunpack.c.l.b16 %v1349
        %v1433 = vunpack.c.h.b16 %v1349
        %v1434 = vunpack.c.l.b16 %v1350
        %v1435 = vunpack.c.h.b16 %v1350
        %v1436 = vunpack.c.l.b16 %v1351
        %v1437 = vunpack.c.h.b16 %v1351
        %v1438 = vunpack.c.l.b16 %v1352
        %v1439 = vunpack.c.h.b16 %v1352
        %v1440 = vunpack.c.l.b16 %v1353
        %v1441 = vunpack.c.h.b16 %v1353
        %v1442 = vunpack.c.l.b16 %v1354
        %v1443 = vunpack.c.h.b16 %v1354
        %v1444 = vunpack.c.l.b16 %v1355
        %v1445 = vunpack.c.h.b16 %v1355
        %v1446 = vunpack.c.l.b16 %v1356
        %v1447 = vunpack.c.h.b16 %v1356
        %v1448 = vunpack.c.l.b16 %v1357
        %v1449 = vunpack.c.h.b16 %v1357
        %v1450 = vunpack.c.l.b16 %v1358
        %v1451 = vunpack.c.h.b16 %v1358
        %v1452 = vunpack.c.l.b16 %v1359
        %v1453 = vunpack.c.h.b16 %v1359
        %v1454 = vunpack.c.l.b16 %v1360
        %v1455 = vunpack.c.h.b16 %v1360
        %v1456 = vunpack.c.l.b16 %v1361
        %v1457 = vunpack.c.h.b16 %v1361
        %v1458 = vpack.c.b16 %v1396, %v1394
        %v1459 = vpack.c.b16 %v1397, %v1395
        %v1460 = vpack.c.b16 %v1400, %v1398
        %v1461 = vpack.c.b16 %v1401, %v1399
        %v1462 = vpack.c.b16 %v1404, %v1402
        %v1463 = vpack.c.b16 %v1405, %v1403
        %v1464 = vpack.c.b16 %v1408, %v1406
        %v1465 = vpack.c.b16 %v1409, %v1407
        %v1466 = vpack.c.b16 %v1412, %v1410
        %v1467 = vpack.c.b16 %v1413, %v1411
        %v1468 = vpack.c.b16 %v1416, %v1414
        %v1469 = vpack.c.b16 %v1417, %v1415
        %v1470 = vpack.c.b16 %v1420, %v1418
        %v1471 = vpack.c.b16 %v1421, %v1419
        %v1472 = vpack.c.b16 %v1424, %v1422
        %v1473 = vpack.c.b16 %v1425, %v1423
        %v1474 = vpack.c.b16 %v1428, %v1426
        %v1475 = vpack.c.b16 %v1429, %v1427
        %v1476 = vpack.c.b16 %v1432, %v1430
        %v1477 = vpack.c.b16 %v1433, %v1431
        %v1478 = vpack.c.b16 %v1436, %v1434
        %v1479 = vpack.c.b16 %v1437, %v1435
        %v1480 = vpack.c.b16 %v1440, %v1438
        %v1481 = vpack.c.b16 %v1441, %v1439
        %v1482 = vpack.c.b16 %v1444, %v1442
        %v1483 = vpack.c.b16 %v1445, %v1443
        %v1484 = vpack.c.b16 %v1448, %v1446
        %v1485 = vpack.c.b16 %v1449, %v1447
        %v1486 = vpack.c.b16 %v1452, %v1450
        %v1487 = vpack.c.b16 %v1453, %v1451
        %v1488 = vpack.c.b16 %v1456, %v1454
        %v1489 = vpack.c.b16 %v1457, %v1455
        %1522 = vmatprep.subr.bf16.mxu0 %v1473
        %1523 = vmatpush1.bf16.msra.mxu0 %v1472
        %1524 = vmatprep.subr.bf16.mxu0 %v1471
        %1525 = vmatpush1.bf16.msra.mxu0 %v1470
        %1526 = vmatprep.subr.bf16.mxu0 %v1469
        %1527 = vmatpush1.bf16.msra.mxu0 %v1468
        %1528 = vmatprep.subr.bf16.mxu0 %v1467
        %1529 = vmatpush1.bf16.msra.mxu0 %v1466
        %1530 = vmatprep.subr.bf16.mxu0 %v1465
        %1531 = vmatpush1.bf16.msra.mxu0 %v1464
        %1532 = vmatprep.subr.bf16.mxu0 %v1463
        %1533 = vmatpush1.bf16.msra.mxu0 %v1462
        %1534 = vmatprep.subr.bf16.mxu0 %v1461
        %1535 = vmatpush1.bf16.msra.mxu0 %v1460
        %1536 = vmatprep.subr.bf16.mxu0 %v1459
        %1537 = vmatpush1.bf16.msra.mxu0 %v1458
        %1538 = vmatprep.subr.bf16.mxu0 %v1489
        %1539 = vmatpush2.bf16.msra.mxu0 %v1488
        %1540 = vmatprep.subr.bf16.mxu0 %v1487
        %1541 = vmatpush2.bf16.msra.mxu0 %v1486
        %1542 = vmatprep.subr.bf16.mxu0 %v1485
        %1543 = vmatpush2.bf16.msra.mxu0 %v1484
        %1544 = vmatprep.subr.bf16.mxu0 %v1483
        %1545 = vmatpush2.bf16.msra.mxu0 %v1482
        %1546 = vmatprep.subr.bf16.mxu0 %v1481
        %1547 = vmatpush2.bf16.msra.mxu0 %v1480
        %1548 = vmatprep.subr.bf16.mxu0 %v1479
        %1549 = vmatpush2.bf16.msra.mxu0 %v1478
        %1550 = vmatprep.subr.bf16.mxu0 %v1477
        %1551 = vmatpush2.bf16.msra.mxu0 %v1476
        %1552 = vmatprep.subr.bf16.mxu0 %v1475
        %1553 = vmatpush2.bf16.msra.mxu0 %v1474
        %1554 = vmatprep.mubr.bf16.mxu0 %v1315
        %1555 = vmatmul.mubr.bf16.gmra.mxu0 %v1314
        %v1556 = vpop.f32.mrf.mxu0
        %v1557 = vadd.f32 0.0, %v1556
        %v1558 = vpop.f32.mrf.mxu0
        %v1559 = vadd.f32 0.0, %v1558
        %v1560 = vpop.f32.mrf.mxu0
        %v1561 = vadd.f32 0.0, %v1560
        %v1562 = vpop.f32.mrf.mxu0
        %v1563 = vadd.f32 0.0, %v1562
        %1564 = vmatprep.mubr.bf16.mxu0 %v1317
        %1565 = vmatmul.mubr.bf16.gmra.mxu0 %v1316
        %v1566 = vpop.f32.mrf.mxu0
        %v1567 = vadd.f32 0.0, %v1566
        %v1568 = vpop.f32.mrf.mxu0
        %v1569 = vadd.f32 0.0, %v1568
        %v1570 = vpop.f32.mrf.mxu0
        %v1571 = vadd.f32 0.0, %v1570
        %v1572 = vpop.f32.mrf.mxu0
        %v1573 = vadd.f32 0.0, %v1572
        %1574 = vmatprep.mubr.bf16.mxu0 %v1319
        %1575 = vmatmul.mubr.bf16.gmra.mxu0 %v1318
        %v1576 = vpop.f32.mrf.mxu0
        %v1577 = vadd.f32 0.0, %v1576
        %v1578 = vpop.f32.mrf.mxu0
        %v1579 = vadd.f32 0.0, %v1578
        %v1580 = vpop.f32.mrf.mxu0
        %v1581 = vadd.f32 0.0, %v1580
        %v1582 = vpop.f32.mrf.mxu0
        %v1583 = vadd.f32 0.0, %v1582
        %1584 = vmatprep.mubr.bf16.mxu0 %v1321
        %1585 = vmatmul.mubr.bf16.gmra.mxu0 %v1320
        %v1586 = vpop.f32.mrf.mxu0
        %v1587 = vadd.f32 0.0, %v1586
        %v1588 = vpop.f32.mrf.mxu0
        %v1589 = vadd.f32 0.0, %v1588
        %v1590 = vpop.f32.mrf.mxu0
        %v1591 = vadd.f32 0.0, %v1590
        %v1592 = vpop.f32.mrf.mxu0
        %v1593 = vadd.f32 0.0, %v1592
        %1594 = vmatprep.mubr.bf16.mxu0 %v1323
        %1595 = vmatmul.mubr.bf16.gmra.mxu0 %v1322
        %v1596 = vpop.f32.mrf.mxu0
        %v1597 = vadd.f32 0.0, %v1596
        %v1598 = vpop.f32.mrf.mxu0
        %v1599 = vadd.f32 0.0, %v1598
        %v1600 = vpop.f32.mrf.mxu0
        %v1601 = vadd.f32 0.0, %v1600
        %v1602 = vpop.f32.mrf.mxu0
        %v1603 = vadd.f32 0.0, %v1602
        %1604 = vmatprep.mubr.bf16.mxu0 %v1325
        %1605 = vmatmul.mubr.bf16.gmra.mxu0 %v1324
        %v1606 = vpop.f32.mrf.mxu0
        %v1607 = vadd.f32 0.0, %v1606
        %v1608 = vpop.f32.mrf.mxu0
        %v1609 = vadd.f32 0.0, %v1608
        %v1610 = vpop.f32.mrf.mxu0
        %v1611 = vadd.f32 0.0, %v1610
        %v1612 = vpop.f32.mrf.mxu0
        %v1613 = vadd.f32 0.0, %v1612
        %1614 = vmatprep.mubr.bf16.mxu0 %v1327
        %1615 = vmatmul.mubr.bf16.gmra.mxu0 %v1326
        %v1616 = vpop.f32.mrf.mxu0
        %v1617 = vadd.f32 0.0, %v1616
        %v1618 = vpop.f32.mrf.mxu0
        %v1619 = vadd.f32 0.0, %v1618
        %v1620 = vpop.f32.mrf.mxu0
        %v1621 = vadd.f32 0.0, %v1620
        %v1622 = vpop.f32.mrf.mxu0
        %v1623 = vadd.f32 0.0, %v1622
        %1624 = vmatprep.mubr.bf16.mxu0 %v1329
        %1625 = vmatmul.mubr.bf16.gmra.mxu0 %v1328
        %v1626 = vpop.f32.mrf.mxu0
        %v1627 = vadd.f32 0.0, %v1626
        %v1628 = vpop.f32.mrf.mxu0
        %v1629 = vadd.f32 0.0, %v1628
        %v1630 = vpop.f32.mrf.mxu0
        %v1631 = vadd.f32 0.0, %v1630
        %v1632 = vpop.f32.mrf.mxu0
        %v1633 = vadd.f32 0.0, %v1632
        %1634 = vdwg.mxu0
        %v1635 = vadd.f32 %v1282, %v1557
        %v1636 = vadd.f32 %v1283, %v1559
        %v1637 = vadd.f32 %v1284, %v1561
        %v1638 = vadd.f32 %v1285, %v1563
        %v1639 = vadd.f32 %v1286, %v1567
        %v1640 = vadd.f32 %v1287, %v1569
        %v1641 = vadd.f32 %v1288, %v1571
        %v1642 = vadd.f32 %v1289, %v1573
        %v1643 = vadd.f32 %v1290, %v1577
        %v1644 = vadd.f32 %v1291, %v1579
        %v1645 = vadd.f32 %v1292, %v1581
        %v1646 = vadd.f32 %v1293, %v1583
        %v1647 = vadd.f32 %v1294, %v1587
        %v1648 = vadd.f32 %v1295, %v1589
        %v1649 = vadd.f32 %v1296, %v1591
        %v1650 = vadd.f32 %v1297, %v1593
        %v1651 = vadd.f32 %v1298, %v1597
        %v1652 = vadd.f32 %v1299, %v1599
        %v1653 = vadd.f32 %v1300, %v1601
        %v1654 = vadd.f32 %v1301, %v1603
        %v1655 = vadd.f32 %v1302, %v1607
        %v1656 = vadd.f32 %v1303, %v1609
        %v1657 = vadd.f32 %v1304, %v1611
        %v1658 = vadd.f32 %v1305, %v1613
        %v1659 = vadd.f32 %v1306, %v1617
        %v1660 = vadd.f32 %v1307, %v1619
        %v1661 = vadd.f32 %v1308, %v1621
        %v1662 = vadd.f32 %v1309, %v1623
        %v1663 = vadd.f32 %v1310, %v1627
        %v1664 = vadd.f32 %v1311, %v1629
        %v1665 = vadd.f32 %v1312, %v1631
        %v1666 = vadd.f32 %v1313, %v1633
        %1667 = vst [vmem:[#allocation2] sm:$0xff] %v1635
        %1668 = vst [vmem:[#allocation2 + $0x8] sm:$0xff] %v1636
        %1669 = vst [vmem:[#allocation2 + $0x10] sm:$0xff] %v1637
        %1670 = vst [vmem:[#allocation2 + $0x18] sm:$0xff] %v1638
        %1671 = vst [vmem:[#allocation2 + $0x20] sm:$0xff] %v1639
        %1672 = vst [vmem:[#allocation2 + $0x28] sm:$0xff] %v1640
        %1673 = vst [vmem:[#allocation2 + $0x30] sm:$0xff] %v1641
        %1674 = vst [vmem:[#allocation2 + $0x38] sm:$0xff] %v1642
        %1675 = vst [vmem:[#allocation2 + $0x40] sm:$0xff] %v1643
        %1676 = vst [vmem:[#allocation2 + $0x48] sm:$0xff] %v1644
        %1677 = vst [vmem:[#allocation2 + $0x50] sm:$0xff] %v1645
        %1678 = vst [vmem:[#allocation2 + $0x58] sm:$0xff] %v1646
        %1679 = vst [vmem:[#allocation2 + $0x60] sm:$0xff] %v1647
        %1680 = vst [vmem:[#allocation2 + $0x68] sm:$0xff] %v1648
        %1681 = vst [vmem:[#allocation2 + $0x70] sm:$0xff] %v1649
        %1682 = vst [vmem:[#allocation2 + $0x78] sm:$0xff] %v1650
        %1683 = vst [vmem:[#allocation2 + $0x80] sm:$0xff] %v1651
        %1684 = vst [vmem:[#allocation2 + $0x88] sm:$0xff] %v1652
        %1685 = vst [vmem:[#allocation2 + $0x90] sm:$0xff] %v1653
        %1686 = vst [vmem:[#allocation2 + $0x98] sm:$0xff] %v1654
        %1687 = vst [vmem:[#allocation2 + $0xa0] sm:$0xff] %v1655
        %1688 = vst [vmem:[#allocation2 + $0xa8] sm:$0xff] %v1656
        %1689 = vst [vmem:[#allocation2 + $0xb0] sm:$0xff] %v1657
        %1690 = vst [vmem:[#allocation2 + $0xb8] sm:$0xff] %v1658
        %1691 = vst [vmem:[#allocation2 + $0xc0] sm:$0xff] %v1659
        %1692 = vst [vmem:[#allocation2 + $0xc8] sm:$0xff] %v1660
        %1693 = vst [vmem:[#allocation2 + $0xd0] sm:$0xff] %v1661
        %1694 = vst [vmem:[#allocation2 + $0xd8] sm:$0xff] %v1662
        %1695 = vst [vmem:[#allocation2 + $0xe0] sm:$0xff] %v1663
        %1696 = vst [vmem:[#allocation2 + $0xe8] sm:$0xff] %v1664
        %1697 = vst [vmem:[#allocation2 + $0xf0] sm:$0xff] %v1665
        %1698 = vst [vmem:[#allocation2 + $0xf8] sm:$0xff] %v1666
        %p1699 = scmp.eq.s32.totalorder %s28, 1
        // Predicated region
        $region49: #{deepseek_mlp.1} parent=31 // pred_check
          %p1700 = pneg %p1699
        $region50: #{deepseek_mlp.1} parent=31 // pred_check_branch
          %1702 = sbr.rel (%p1700) target = $region52
        $region51: #{deepseek_mlp.1} parent=31 // pred_region
          %v1703 = vld [vmem:[#allocation2] sm:$0xff]
          %v1704 = vld [vmem:[#allocation2 + $0x8] sm:$0xff]
          %v1705 = vld [vmem:[#allocation2 + $0x10] sm:$0xff]
          %v1706 = vld [vmem:[#allocation2 + $0x18] sm:$0xff]
          %v1707 = vld [vmem:[#allocation2 + $0x20] sm:$0xff]
          %v1708 = vld [vmem:[#allocation2 + $0x28] sm:$0xff]
          %v1709 = vld [vmem:[#allocation2 + $0x30] sm:$0xff]
          %v1710 = vld [vmem:[#allocation2 + $0x38] sm:$0xff]
          %v1711 = vld [vmem:[#allocation2 + $0x40] sm:$0xff]
          %v1712 = vld [vmem:[#allocation2 + $0x48] sm:$0xff]
          %v1713 = vld [vmem:[#allocation2 + $0x50] sm:$0xff]
          %v1714 = vld [vmem:[#allocation2 + $0x58] sm:$0xff]
          %v1715 = vld [vmem:[#allocation2 + $0x60] sm:$0xff]
          %v1716 = vld [vmem:[#allocation2 + $0x68] sm:$0xff]
          %v1717 = vld [vmem:[#allocation2 + $0x70] sm:$0xff]
          %v1718 = vld [vmem:[#allocation2 + $0x78] sm:$0xff]
          %v1719 = vld [vmem:[#allocation2 + $0x80] sm:$0xff]
          %v1720 = vld [vmem:[#allocation2 + $0x88] sm:$0xff]
          %v1721 = vld [vmem:[#allocation2 + $0x90] sm:$0xff]
          %v1722 = vld [vmem:[#allocation2 + $0x98] sm:$0xff]
          %v1723 = vld [vmem:[#allocation2 + $0xa0] sm:$0xff]
          %v1724 = vld [vmem:[#allocation2 + $0xa8] sm:$0xff]
          %v1725 = vld [vmem:[#allocation2 + $0xb0] sm:$0xff]
          %v1726 = vld [vmem:[#allocation2 + $0xb8] sm:$0xff]
          %v1727 = vld [vmem:[#allocation2 + $0xc0] sm:$0xff]
          %v1728 = vld [vmem:[#allocation2 + $0xc8] sm:$0xff]
          %v1729 = vld [vmem:[#allocation2 + $0xd0] sm:$0xff]
          %v1730 = vld [vmem:[#allocation2 + $0xd8] sm:$0xff]
          %v1731 = vld [vmem:[#allocation2 + $0xe0] sm:$0xff]
          %v1732 = vld [vmem:[#allocation2 + $0xe8] sm:$0xff]
          %v1733 = vld [vmem:[#allocation2 + $0xf0] sm:$0xff]
          %v1734 = vld [vmem:[#allocation2 + $0xf8] sm:$0xff]
          %v1735 = vpack.c.bf16 %v1705, %v1703
          %v1736 = vpack.c.bf16 %v1706, %v1704
          %v1737 = vpack.c.bf16 %v1709, %v1707
          %v1738 = vpack.c.bf16 %v1710, %v1708
          %v1739 = vpack.c.bf16 %v1713, %v1711
          %v1740 = vpack.c.bf16 %v1714, %v1712
          %v1741 = vpack.c.bf16 %v1717, %v1715
          %v1742 = vpack.c.bf16 %v1718, %v1716
          %v1743 = vpack.c.bf16 %v1721, %v1719
          %v1744 = vpack.c.bf16 %v1722, %v1720
          %v1745 = vpack.c.bf16 %v1725, %v1723
          %v1746 = vpack.c.bf16 %v1726, %v1724
          %v1747 = vpack.c.bf16 %v1729, %v1727
          %v1748 = vpack.c.bf16 %v1730, %v1728
          %v1749 = vpack.c.bf16 %v1733, %v1731
          %v1750 = vpack.c.bf16 %v1734, %v1732
          %v1767 = vunpack.c.l.b16 %v1735
          %v1768 = vunpack.c.l.b16 %v1736
          %v1769 = vunpack.c.h.b16 %v1735
          %v1770 = vunpack.c.h.b16 %v1736
          %v1771 = vunpack.c.l.b16 %v1737
          %v1772 = vunpack.c.l.b16 %v1738
          %v1773 = vunpack.c.h.b16 %v1737
          %v1774 = vunpack.c.h.b16 %v1738
          %v1775 = vunpack.c.l.b16 %v1739
          %v1776 = vunpack.c.l.b16 %v1740
          %v1777 = vunpack.c.h.b16 %v1739
          %v1778 = vunpack.c.h.b16 %v1740
          %v1779 = vunpack.c.l.b16 %v1741
          %v1780 = vunpack.c.l.b16 %v1742
          %v1781 = vunpack.c.h.b16 %v1741
          %v1782 = vunpack.c.h.b16 %v1742
          %v1783 = vunpack.c.l.b16 %v1743
          %v1784 = vunpack.c.l.b16 %v1744
          %v1785 = vunpack.c.h.b16 %v1743
          %v1786 = vunpack.c.h.b16 %v1744
          %v1787 = vunpack.c.l.b16 %v1745
          %v1788 = vunpack.c.l.b16 %v1746
          %v1789 = vunpack.c.h.b16 %v1745
          %v1790 = vunpack.c.h.b16 %v1746
          %v1791 = vunpack.c.l.b16 %v1747
          %v1792 = vunpack.c.l.b16 %v1748
          %v1793 = vunpack.c.h.b16 %v1747
          %v1794 = vunpack.c.h.b16 %v1748
          %v1795 = vunpack.c.l.b16 %v1749
          %v1796 = vunpack.c.l.b16 %v1750
          %v1797 = vunpack.c.h.b16 %v1749
          %v1798 = vunpack.c.h.b16 %v1750
          %v1799 = vpack.c.b16 %v1768, %v1767
          %v1800 = vpack.c.b16 %v1770, %v1769
          %v1801 = vpack.c.b16 %v1772, %v1771
          %v1802 = vpack.c.b16 %v1774, %v1773
          %v1803 = vpack.c.b16 %v1776, %v1775
          %v1804 = vpack.c.b16 %v1778, %v1777
          %v1805 = vpack.c.b16 %v1780, %v1779
          %v1806 = vpack.c.b16 %v1782, %v1781
          %v1807 = vpack.c.b16 %v1784, %v1783
          %v1808 = vpack.c.b16 %v1786, %v1785
          %v1809 = vpack.c.b16 %v1788, %v1787
          %v1810 = vpack.c.b16 %v1790, %v1789
          %v1811 = vpack.c.b16 %v1792, %v1791
          %v1812 = vpack.c.b16 %v1794, %v1793
          %v1813 = vpack.c.b16 %v1796, %v1795
          %v1814 = vpack.c.b16 %v1798, %v1797
          %1831 = vst [vmem:[%s279] sm:$0xff] %v1799
          %1832 = vst [vmem:[%s279 + $0x8] sm:$0xff] %v1800
          %1833 = vst [vmem:[%s279 + $0x10] sm:$0xff] %v1801
          %1834 = vst [vmem:[%s279 + $0x18] sm:$0xff] %v1802
          %1835 = vst [vmem:[%s279 + $0x20] sm:$0xff] %v1803
          %1836 = vst [vmem:[%s279 + $0x28] sm:$0xff] %v1804
          %1837 = vst [vmem:[%s279 + $0x30] sm:$0xff] %v1805
          %1838 = vst [vmem:[%s279 + $0x38] sm:$0xff] %v1806
          %1839 = vst [vmem:[%s279 + $0x40] sm:$0xff] %v1807
          %1840 = vst [vmem:[%s279 + $0x48] sm:$0xff] %v1808
          %1841 = vst [vmem:[%s279 + $0x50] sm:$0xff] %v1809
          %1842 = vst [vmem:[%s279 + $0x58] sm:$0xff] %v1810
          %1843 = vst [vmem:[%s279 + $0x60] sm:$0xff] %v1811
          %1844 = vst [vmem:[%s279 + $0x68] sm:$0xff] %v1812
          %1845 = vst [vmem:[%s279 + $0x70] sm:$0xff] %v1813
          %1846 = vst [vmem:[%s279 + $0x78] sm:$0xff] %v1814
        $region52: #{deepseek_mlp.1} parent=31 // pred_fallthru
          _
        %s1847 = sand.u32 %s121, 1
        %s1848 = scalar_lea.sflag [#allocation5], %s1847
        %s1849 = sand.u32 %s121, 1
        %s1850 = smul.addr %s1849, 128
        %s1851 = scalar_lea.vmem [#allocation9], %s1850
        // Predicated region
        $region53: #{deepseek_mlp.1} parent=31 // pred_check
          %p1852 = pneg %p131
        $region54: #{deepseek_mlp.1} parent=31 // pred_check_branch
          %1854 = sbr.rel (%p1852) target = $region56
        $region55: #{deepseek_mlp.1} parent=31 // pred_region
          %s1855 = smul.u32 16, %s27
          %s1857 = ssub.s32 2048, 2048
          %1858 = vsyncadd %s1848, %s1857
          %s1859 = smul.addr %s1855, 2
          %s1860 = smul.addr %s1859, 64
          %s1861 = scalar_lea.hbm %s3, %s1860
          %s1862 = sshll.u32 %s1851, 4
          %s1863 = int_to_ptr.vmem [resolvable:$true] %s1862
          %1868 = dma.vmem_to_hbm [thread:$0]  %s1863, 2048, %s1861, %s1848, 128, 128, 8
        $region56: #{deepseek_mlp.1} parent=31 // pred_fallthru
          _
      $region32: #{deepseek_mlp.1} parent=5 // pred_fallthru
        _
      %p1869 = scmp.le.s32.totalorder 2, %s18
      // Predicated region
      $region57: #{deepseek_mlp.1} parent=5 // pred_check
        %p1870 = pneg %p1869
      $region58: #{deepseek_mlp.1} parent=5 // pred_check_branch
        %1872 = sbr.rel (%p1870) target = $region60
      $region59: #{deepseek_mlp.1} parent=5 // pred_region
        %s1873 = ssub.s32 %s18, 2
        // Predicated region
        $region61: #{deepseek_mlp.1} parent=59 // pred_check
          %p1874 = pneg %p137
        $region62: #{deepseek_mlp.1} parent=59 // pred_check_branch
          %1876 = sbr.rel (%p1874) target = $region64
        $region63: #{deepseek_mlp.1} parent=59 // pred_region
          %s1877 = sand.u32 %s122, 1
          %s1878 = scalar_lea.sflag [#allocation5], %s1877
          %s1879 = sand.u32 %s122, 1
          %s1880 = smul.addr %s1879, 128
          %s1881 = scalar_lea.vmem [#allocation9], %s1880
          %1882 = dma.done %s1878, 2048
        $region64: #{deepseek_mlp.1} parent=59 // pred_fallthru
          _
      $region60: #{deepseek_mlp.1} parent=5 // pred_fallthru
        _
    $region6: #{deepseek_mlp.1} parent=1 // loop_footer
      %s22 = sadd.s32 1, %s18
    $region7: #{deepseek_mlp.1} parent=1 // loop_footer_branch
      %17 = sbr.rel target = $region3
    $region8: #{deepseek_mlp.1} parent=1 // loop_exit
      _
    %1883 = vsyncpa [#allocation4], 1
    %s1884 = scalar_lea.sflag [#allocation4], 1
    %1885 = vsyncpa %s1884, 1
    %1886 = vsyncpa [#allocation7], 1
    %s1887 = scalar_lea.sflag [#allocation7], 1
    %1888 = vsyncpa %s1887, 1
    %1889 = vsyncpa [#allocation5], 1
    %s1890 = scalar_lea.sflag [#allocation5], 1
    %1891 = vsyncpa %s1890, 1

</llo_original>
